<compile_context>
chip_gen: v7x
topology: tpu7x:2x2x1
jax: 0.10.0
libtpu: 0.0.40
codegen_flags: <defaults>
</compile_context>

<pallas_src>
import functools

import jax
import jax.numpy as jnp
from jax.experimental import pallas as pl
from jax.experimental.pallas import tpu as pltpu


LANE = 128      # vreg lane width  (last-dim tiling)
SUBLANE = 8     # vreg sublane width (second-to-last dim tiling, f32)


def _round_up(x, m):
    return (x + m - 1) // m * m


def _pad2(a, rows, cols):
    r, c = a.shape
    return jnp.pad(a, ((0, rows - r), (0, cols - c)))


# ----------------------------------------------------------------------------
# Fused kernel: whole Autoencoder forward for one batch tile
# ----------------------------------------------------------------------------
def _fused_autoencoder_kernel(x_ref, *refs):
    """refs layout:
         refs[0:10]  weights: we0, we1, we2, wy0, wy1, wy2, wdz, wdy, wd1, wd2
         refs[10:19] biases : be0, be1, be2, by0, by1, by2, bd0, bd1, bd2
         refs[19:22] outputs: recon_ref, ypred_ref, l2_ref
       Weights / biases are whole-array VMEM residents (single-buffered); the
       chain of activations lives entirely in vregs / VMEM.
    """
    w = refs[0:10]
    b = refs[10:19]
    recon_ref, ypred_ref, l2_ref = refs[19:22]

    f32 = jnp.float32

    def lin(h, wi, bi, relu):
        # MXU matmul in the weights' dtype (f32 or bf16) with f32 accumulation;
        # bias add + ReLU epilogue stays in f32 (VPU fast path on all chips).
        acc = jnp.dot(h.astype(wi.dtype), wi[...], preferred_element_type=f32)
        acc = acc + bi[...].astype(f32)
        return jnp.maximum(acc, 0.0) if relu else acc

    x = x_ref[...]

    # encoder (Dropout == identity at eval time)
    h = lin(x, w[0], b[0], True)
    h = lin(h, w[1], b[1], True)
    z = lin(h, w[2], b[2], False)

    # y_network
    h = lin(z, w[3], b[3], True)
    h = lin(h, w[4], b[4], True)
    y = lin(h, w[5], b[5], False)
    ypred_ref[...] = y.astype(ypred_ref.dtype)

    # decoder: cat(z, y) @ W_d0  ==  z @ W_z + y @ W_y   (no concat materialized)
    hd = jnp.dot(z.astype(w[6].dtype), w[6][...], preferred_element_type=f32)
    hd = hd + jnp.dot(y.astype(w[7].dtype), w[7][...], preferred_element_type=f32)
    h = jnp.maximum(hd + b[6][...].astype(f32), 0.0)
    h = lin(h, w[8], b[7], True)
    recon = lin(h, w[9], b[8], False)
    recon_ref[...] = recon.astype(recon_ref.dtype)

    # ------------------------------------------------------------------ L2 --
    # The L2 term is batch-independent: compute it on tile 0 only; other tiles
    # just write a zero slab (their output block is dead).  Zero padding of the
    # parameters contributes nothing, so this matches the unpadded norms.
    l2_ref[...] = jnp.zeros(l2_ref.shape, f32)

    @pl.when(pl.program_id(0) == 0)
    def _():
        def ssq(ref):
            # Row-chunked sum of squares to bound vreg pressure at large sizes.
            rows = ref.shape[0]
            step = min(rows, 256)
            total = jnp.float32(0.0)
            for s in range(0, rows, step):
                v = ref[s:s + step, :].astype(f32)
                total = total + jnp.sum(v * v)
            return total

        # decoder[0]'s weight was split into (w[6], w[7]); norm it as ONE param.
        l2 = jnp.sqrt(ssq(w[6]) + ssq(w[7]))
        for r in (w[0], w[1], w[2], w[3], w[4], w[5], w[8], w[9],
                  b[0], b[1], b[2], b[3], b[4], b[5], b[6], b[7], b[8]):
            l2 = l2 + jnp.sqrt(ssq(r))
        # Lane-dense (8, 128) scalar slab -> unmasked store; wrapper reads [0, 0].
        l2_ref[...] = jnp.zeros(l2_ref.shape, f32) + l2


# ----------------------------------------------------------------------------
# Wrapper: padding, specs, single pallas_call
# ----------------------------------------------------------------------------
def autoencoder_forward(params, x, l2_reg, *, batch_tile=256, use_bf16=False):
    B, input_dim = x.shape
    hidden_dim = params["encoder"][0][0].shape[1]
    latent_dim = params["encoder"][2][0].shape[1]
    outcome_dim = params["y_network"][2][0].shape[1]

    # Pad every feature dim to a lane multiple.
    di = _round_up(input_dim, LANE)
    dh = _round_up(hidden_dim, LANE)
    dl = _round_up(latent_dim, LANE)
    do = _round_up(outcome_dim, LANE)

    wdt = jnp.bfloat16 if use_bf16 else jnp.float32
    itemsize = 2 if use_bf16 else 4
    row_mult = 16 if use_bf16 else SUBLANE   # bf16 packs 16 rows per sublane group

    # Batch tile: large enough to fill the MXU's LHS rows (128 on v5e, 256 on
    # v6e/v7x), but never larger than the (padded) batch itself.
    bt = _round_up(min(max(batch_tile, row_mult), _round_up(B, row_mult)), row_mult)
    bp = _round_up(B, bt)
    # v7x megacore: prefer >= 2 batch tiles so both TensorCores get work
    # (tile 0 additionally carries the L2 work — the only imbalance).
    if bp // bt < 2 and bt > row_mult:
        bt_half = _round_up((bt + 1) // 2, row_mult)
        if _round_up(B, bt_half) // bt_half >= 2:
            bt = bt_half
            bp = _round_up(B, bt)
    n_tiles = bp // bt

    (we0, be0), (we1, be1), (we2, be2) = params["encoder"]
    (wy0, by0), (wy1, by1), (wy2, by2) = params["y_network"]
    (wd0, bd0), (wd1, bd1), (wd2, bd2) = params["decoder"]

    # Split decoder[0] weight so the z / y_pred concat is never materialized.
    wdz, wdy = wd0[:latent_dim], wd0[latent_dim:]

    weights = [
        _pad2(we0, di, dh), _pad2(we1, dh, dh), _pad2(we2, dh, dl),
        _pad2(wy0, dl, dh), _pad2(wy1, dh, dh), _pad2(wy2, dh, do),
        _pad2(wdz, dl, dh), _pad2(wdy, do, dh),
        _pad2(wd1, dh, dh), _pad2(wd2, dh, di),
    ]
    weights = [w.astype(wdt) for w in weights]
    # TODO(synk): with use_bf16=True the in-kernel L2 norms are computed on the
    # bf16 weight copies (negligible drift for a regularizer).
    biases = [
        _pad2(be0.reshape(1, -1), 1, dh), _pad2(be1.reshape(1, -1), 1, dh),
        _pad2(be2.reshape(1, -1), 1, dl),
        _pad2(by0.reshape(1, -1), 1, dh), _pad2(by1.reshape(1, -1), 1, dh),
        _pad2(by2.reshape(1, -1), 1, do),
        _pad2(bd0.reshape(1, -1), 1, dh), _pad2(bd1.reshape(1, -1), 1, dh),
        _pad2(bd2.reshape(1, -1), 1, di),
    ]
    biases = [b.astype(wdt) for b in biases]

    x_pad = jnp.pad(x, ((0, bp - B), (0, di - input_dim))).astype(wdt)

    # Whole-array VMEM residents: DMA'd in once, single-buffered (no wasted
    # second pipeline buffer for grid-invariant operands).
    resident_spec = pl.BlockSpec(memory_space=pltpu.MemorySpace.VMEM)

    in_specs = (
        [pl.BlockSpec((bt, di), lambda i: (i, 0))]
        + [resident_spec] * (len(weights) + len(biases))
    )
    out_specs = [
        pl.BlockSpec((bt, di), lambda i: (i, 0)),          # recon_x (lane-dense)
        pl.BlockSpec((bt, do), lambda i: (i, 0)),          # y_pred  (lane-dense)
        pl.BlockSpec((SUBLANE, LANE), lambda i: (i, 0)),   # per-tile l2 slab
    ]
    out_shape = [
        jax.ShapeDtypeStruct((bp, di), jnp.float32),
        jax.ShapeDtypeStruct((bp, do), jnp.float32),
        jax.ShapeDtypeStruct((n_tiles * SUBLANE, LANE), jnp.float32),
    ]

    # VMEM budget derived from the actual shapes (+ headroom), instead of a
    # hard-coded limit: residents (single-buffered) + double-buffered I/O
    # blocks + live-activation / spill headroom.  Capped at 100 MiB (v6e/v5e
    # physical is 128 MiB); with bf16 weights this stays well under v7x's 64 MiB.
    resident_bytes = sum(int(a.size) * itemsize for a in weights + biases)
    stream_bytes = 2 * (bt * di * itemsize + bt * (di + do) * 4
                        + SUBLANE * LANE * 4)
    act_bytes = 8 * bt * max(di, dh, dl, do) * 4
    vmem_limit = int(min(max(resident_bytes + stream_bytes + act_bytes
                             + (8 << 20), 32 << 20), 100 << 20))

    recon_p, ypred_p, l2_vec = pl.pallas_call(
        _fused_autoencoder_kernel,
        out_shape=out_shape,
        grid=(n_tiles,),
        in_specs=in_specs,
        out_specs=out_specs,
        compiler_params=pltpu.CompilerParams(
            # Batch tiles are independent -> megacore can shard them.
            dimension_semantics=("parallel",),
            vmem_limit_bytes=vmem_limit,
        ),
    )(x_pad, *weights, *biases)

    recon_x = recon_p[:B, :input_dim]
    y_pred = ypred_p[:B, :outcome_dim]
    l2_term = jnp.float32(l2_reg) * l2_vec[0, 0]
    return recon_x, y_pred, l2_term


# ----------------------------------------------------------------------------
# Parameter construction (deterministic, synthetic; mirrors nn.Linear init).
# Weights are stored as (in_features, out_features) so the kernel computes
# y = x @ W + b with no transpose.
# ----------------------------------------------------------------------------
def init_linear(key, in_dim, out_dim):
    kw, kb = jax.random.split(key)
    scale = 1.0 / jnp.sqrt(jnp.float32(in_dim))
    w = jax.random.uniform(kw, (in_dim, out_dim), jnp.float32, -scale, scale)
    b = jax.random.uniform(kb, (out_dim,), jnp.float32, -scale, scale)
    return w, b


def init_params(key, input_dim, hidden_dim, latent_dim, outcome_dim):
    keys = jax.random.split(key, 9)
    return {
        "encoder": [
            init_linear(keys[0], input_dim, hidden_dim),
            init_linear(keys[1], hidden_dim, hidden_dim),
            init_linear(keys[2], hidden_dim, latent_dim),
        ],
        "y_network": [
            init_linear(keys[3], latent_dim, hidden_dim),
            init_linear(keys[4], hidden_dim, hidden_dim),
            init_linear(keys[5], hidden_dim, outcome_dim),
        ],
        "decoder": [
            init_linear(keys[6], latent_dim + outcome_dim, hidden_dim),
            init_linear(keys[7], hidden_dim, hidden_dim),
            init_linear(keys[8], hidden_dim, input_dim),
        ],
    }


# ----------------------------------------------------------------------------
# Pure-JAX reference (for a correctness sanity check)
# ----------------------------------------------------------------------------
def _reference_forward(params, x, l2_reg):
    hp = jax.lax.Precision.HIGHEST

    def lin(h, w, b, relu):
        y = jnp.dot(h, w, precision=hp) + b
        return jnp.maximum(y, 0.0) if relu else y

    enc, yn, dec = params["encoder"], params["y_network"], params["decoder"]
    h = lin(x, *enc[0], True); h = lin(h, *enc[1], True); z = lin(h, *enc[2], False)
    h = lin(z, *yn[0], True); h = lin(h, *yn[1], True); y = lin(h, *yn[2], False)
    c = jnp.concatenate([z, y], axis=1)
    h = lin(c, *dec[0], True); h = lin(h, *dec[1], True); r = lin(h, *dec[2], False)
    l2 = jnp.float32(0.0)
    for grp in (enc, yn, dec):
        for (w, b) in grp:
            l2 = l2 + jnp.linalg.norm(w) + jnp.linalg.norm(b)
    return r, y, jnp.float32(l2_reg) * l2


# ----------------------------------------------------------------------------
# Main
# ----------------------------------------------------------------------------
if __name__ == "__main__":
    # Small shapes consistent with the module (scaled down from hidden_dim=2048,
    # latent_dim=128).
    batch = 8
    input_dim = 32
    hidden_dim = 128
    latent_dim = 32
    outcome_dim = 8
    l2_reg = 1e-3

    key = jax.random.PRNGKey(0)
    kx, kp = jax.random.split(key)
    x = jax.random.normal(kx, (batch, input_dim), jnp.float32)
    params = init_params(kp, input_dim, hidden_dim, latent_dim, outcome_dim)

    fwd = jax.jit(functools.partial(autoencoder_forward, l2_reg=l2_reg))
    recon_x, y_pred, l2_term = fwd(params, x)
    jax.block_until_ready((recon_x, y_pred, l2_term))

    assert recon_x.shape == (batch, input_dim)
    assert y_pred.shape == (batch, outcome_dim)
    assert l2_term.shape == ()

    r_ref, y_ref, l2_ref = _reference_forward(params, x, l2_reg)
    assert jnp.allclose(recon_x, r_ref, rtol=1e-2, atol=1e-2)
    assert jnp.allclose(y_pred, y_ref, rtol=1e-2, atol=1e-2)
    assert jnp.allclose(l2_term, l2_ref, rtol=1e-2, atol=1e-2)

    print("KERNEL_OK")
</pallas_src>

<mosaic_0001>
module attributes {stable_mosaic.version = 11 : i64} {
  func.func @_fused_autoencoder_kernel(%arg0: i32, %arg1: memref<8x128xf32, #tpu.memory_space<vmem>>, %arg2: memref<128x128xf32, #tpu.memory_space<vmem>>, %arg3: memref<128x128xf32, #tpu.memory_space<vmem>>, %arg4: memref<128x128xf32, #tpu.memory_space<vmem>>, %arg5: memref<128x128xf32, #tpu.memory_space<vmem>>, %arg6: memref<128x128xf32, #tpu.memory_space<vmem>>, %arg7: memref<128x128xf32, #tpu.memory_space<vmem>>, %arg8: memref<128x128xf32, #tpu.memory_space<vmem>>, %arg9: memref<128x128xf32, #tpu.memory_space<vmem>>, %arg10: memref<128x128xf32, #tpu.memory_space<vmem>>, %arg11: memref<128x128xf32, #tpu.memory_space<vmem>>, %arg12: memref<1x128xf32, #tpu.memory_space<vmem>>, %arg13: memref<1x128xf32, #tpu.memory_space<vmem>>, %arg14: memref<1x128xf32, #tpu.memory_space<vmem>>, %arg15: memref<1x128xf32, #tpu.memory_space<vmem>>, %arg16: memref<1x128xf32, #tpu.memory_space<vmem>>, %arg17: memref<1x128xf32, #tpu.memory_space<vmem>>, %arg18: memref<1x128xf32, #tpu.memory_space<vmem>>, %arg19: memref<1x128xf32, #tpu.memory_space<vmem>>, %arg20: memref<1x128xf32, #tpu.memory_space<vmem>>, %arg21: memref<8x128xf32, #tpu.memory_space<vmem>>, %arg22: memref<8x128xf32, #tpu.memory_space<vmem>>, %arg23: memref<8x128xf32, #tpu.memory_space<vmem>>) attributes {dimension_semantics = [#tpu.dimension_semantics<parallel>], iteration_bounds = array<i64: 1>, scalar_prefetch = 0 : i64, scratch_operands = 0 : i64, tpu.core_type = #tpu.core_type<tc>, window_params = [{transform_indices = @transform_0, window_bounds = array<i64: 8, 128>}, {pipeline_mode = #tpu.pipeline_mode<synchronous>, transform_indices = @transform_1, window_bounds = array<i64: 128, 128>}, {pipeline_mode = #tpu.pipeline_mode<synchronous>, transform_indices = @transform_2, window_bounds = array<i64: 128, 128>}, {pipeline_mode = #tpu.pipeline_mode<synchronous>, transform_indices = @transform_3, window_bounds = array<i64: 128, 128>}, {pipeline_mode = #tpu.pipeline_mode<synchronous>, transform_indices = @transform_4, window_bounds = array<i64: 128, 128>}, {pipeline_mode = #tpu.pipeline_mode<synchronous>, transform_indices = @transform_5, window_bounds = array<i64: 128, 128>}, {pipeline_mode = #tpu.pipeline_mode<synchronous>, transform_indices = @transform_6, window_bounds = array<i64: 128, 128>}, {pipeline_mode = #tpu.pipeline_mode<synchronous>, transform_indices = @transform_7, window_bounds = array<i64: 128, 128>}, {pipeline_mode = #tpu.pipeline_mode<synchronous>, transform_indices = @transform_8, window_bounds = array<i64: 128, 128>}, {pipeline_mode = #tpu.pipeline_mode<synchronous>, transform_indices = @transform_9, window_bounds = array<i64: 128, 128>}, {pipeline_mode = #tpu.pipeline_mode<synchronous>, transform_indices = @transform_10, window_bounds = array<i64: 128, 128>}, {pipeline_mode = #tpu.pipeline_mode<synchronous>, transform_indices = @transform_11, window_bounds = array<i64: 1, 128>}, {pipeline_mode = #tpu.pipeline_mode<synchronous>, transform_indices = @transform_12, window_bounds = array<i64: 1, 128>}, {pipeline_mode = #tpu.pipeline_mode<synchronous>, transform_indices = @transform_13, window_bounds = array<i64: 1, 128>}, {pipeline_mode = #tpu.pipeline_mode<synchronous>, transform_indices = @transform_14, window_bounds = array<i64: 1, 128>}, {pipeline_mode = #tpu.pipeline_mode<synchronous>, transform_indices = @transform_15, window_bounds = array<i64: 1, 128>}, {pipeline_mode = #tpu.pipeline_mode<synchronous>, transform_indices = @transform_16, window_bounds = array<i64: 1, 128>}, {pipeline_mode = #tpu.pipeline_mode<synchronous>, transform_indices = @transform_17, window_bounds = array<i64: 1, 128>}, {pipeline_mode = #tpu.pipeline_mode<synchronous>, transform_indices = @transform_18, window_bounds = array<i64: 1, 128>}, {pipeline_mode = #tpu.pipeline_mode<synchronous>, transform_indices = @transform_19, window_bounds = array<i64: 1, 128>}, {transform_indices = @transform_20, window_bounds = array<i64: 8, 128>}, {transform_indices = @transform_21, window_bounds = array<i64: 8, 128>}, {transform_indices = @transform_22, window_bounds = array<i64: 8, 128>}]} {
    %c0 = arith.constant 0 : index
    %c0_0 = arith.constant 0 : index
    %0 = vector.load %arg1[%c0, %c0_0] : memref<8x128xf32, #tpu.memory_space<vmem>>, vector<8x128xf32>
    %c0_1 = arith.constant 0 : index
    %c0_2 = arith.constant 0 : index
    %1 = vector.load %arg2[%c0_1, %c0_2] : memref<128x128xf32, #tpu.memory_space<vmem>>, vector<128x128xf32>
    %cst = arith.constant dense<0.000000e+00> : vector<8x128xf32>
    %2 = tpu.matmul %0, %1, %cst {dimension_numbers = #tpu.dot_dimension_numbers<[1], [0], [0], [1], [0, 0, 1, 1], [], []>} : vector<8x128xf32>, vector<128x128xf32>, vector<8x128xf32> -> vector<8x128xf32>
    %c0_3 = arith.constant 0 : index
    %c0_4 = arith.constant 0 : index
    %3 = vector.load %arg12[%c0_3, %c0_4] : memref<1x128xf32, #tpu.memory_space<vmem>>, vector<1x128xf32>
    %4 = vector.broadcast %3 : vector<1x128xf32> to vector<8x128xf32>
    %5 = arith.addf %2, %4 : vector<8x128xf32>
    %cst_5 = arith.constant 0.000000e+00 : f32
    %6 = vector.broadcast %cst_5 : f32 to vector<8x128xf32>
    %7 = arith.maximumf %5, %6 : vector<8x128xf32>
    %c0_6 = arith.constant 0 : index
    %c0_7 = arith.constant 0 : index
    %8 = vector.load %arg3[%c0_6, %c0_7] : memref<128x128xf32, #tpu.memory_space<vmem>>, vector<128x128xf32>
    %cst_8 = arith.constant dense<0.000000e+00> : vector<8x128xf32>
    %9 = tpu.matmul %7, %8, %cst_8 {dimension_numbers = #tpu.dot_dimension_numbers<[1], [0], [0], [1], [0, 0, 1, 1], [], []>} : vector<8x128xf32>, vector<128x128xf32>, vector<8x128xf32> -> vector<8x128xf32>
    %c0_9 = arith.constant 0 : index
    %c0_10 = arith.constant 0 : index
    %10 = vector.load %arg13[%c0_9, %c0_10] : memref<1x128xf32, #tpu.memory_space<vmem>>, vector<1x128xf32>
    %11 = vector.broadcast %10 : vector<1x128xf32> to vector<8x128xf32>
    %12 = arith.addf %9, %11 : vector<8x128xf32>
    %cst_11 = arith.constant 0.000000e+00 : f32
    %13 = vector.broadcast %cst_11 : f32 to vector<8x128xf32>
    %14 = arith.maximumf %12, %13 : vector<8x128xf32>
    %c0_12 = arith.constant 0 : index
    %c0_13 = arith.constant 0 : index
    %15 = vector.load %arg4[%c0_12, %c0_13] : memref<128x128xf32, #tpu.memory_space<vmem>>, vector<128x128xf32>
    %cst_14 = arith.constant dense<0.000000e+00> : vector<8x128xf32>
    %16 = tpu.matmul %14, %15, %cst_14 {dimension_numbers = #tpu.dot_dimension_numbers<[1], [0], [0], [1], [0, 0, 1, 1], [], []>} : vector<8x128xf32>, vector<128x128xf32>, vector<8x128xf32> -> vector<8x128xf32>
    %c0_15 = arith.constant 0 : index
    %c0_16 = arith.constant 0 : index
    %17 = vector.load %arg14[%c0_15, %c0_16] : memref<1x128xf32, #tpu.memory_space<vmem>>, vector<1x128xf32>
    %18 = vector.broadcast %17 : vector<1x128xf32> to vector<8x128xf32>
    %19 = arith.addf %16, %18 : vector<8x128xf32>
    %c0_17 = arith.constant 0 : index
    %c0_18 = arith.constant 0 : index
    %20 = vector.load %arg5[%c0_17, %c0_18] : memref<128x128xf32, #tpu.memory_space<vmem>>, vector<128x128xf32>
    %cst_19 = arith.constant dense<0.000000e+00> : vector<8x128xf32>
    %21 = tpu.matmul %19, %20, %cst_19 {dimension_numbers = #tpu.dot_dimension_numbers<[1], [0], [0], [1], [0, 0, 1, 1], [], []>} : vector<8x128xf32>, vector<128x128xf32>, vector<8x128xf32> -> vector<8x128xf32>
    %c0_20 = arith.constant 0 : index
    %c0_21 = arith.constant 0 : index
    %22 = vector.load %arg15[%c0_20, %c0_21] : memref<1x128xf32, #tpu.memory_space<vmem>>, vector<1x128xf32>
    %23 = vector.broadcast %22 : vector<1x128xf32> to vector<8x128xf32>
    %24 = arith.addf %21, %23 : vector<8x128xf32>
    %cst_22 = arith.constant 0.000000e+00 : f32
    %25 = vector.broadcast %cst_22 : f32 to vector<8x128xf32>
    %26 = arith.maximumf %24, %25 : vector<8x128xf32>
    %c0_23 = arith.constant 0 : index
    %c0_24 = arith.constant 0 : index
    %27 = vector.load %arg6[%c0_23, %c0_24] : memref<128x128xf32, #tpu.memory_space<vmem>>, vector<128x128xf32>
    %cst_25 = arith.constant dense<0.000000e+00> : vector<8x128xf32>
    %28 = tpu.matmul %26, %27, %cst_25 {dimension_numbers = #tpu.dot_dimension_numbers<[1], [0], [0], [1], [0, 0, 1, 1], [], []>} : vector<8x128xf32>, vector<128x128xf32>, vector<8x128xf32> -> vector<8x128xf32>
    %c0_26 = arith.constant 0 : index
    %c0_27 = arith.constant 0 : index
    %29 = vector.load %arg16[%c0_26, %c0_27] : memref<1x128xf32, #tpu.memory_space<vmem>>, vector<1x128xf32>
    %30 = vector.broadcast %29 : vector<1x128xf32> to vector<8x128xf32>
    %31 = arith.addf %28, %30 : vector<8x128xf32>
    %cst_28 = arith.constant 0.000000e+00 : f32
    %32 = vector.broadcast %cst_28 : f32 to vector<8x128xf32>
    %33 = arith.maximumf %31, %32 : vector<8x128xf32>
    %c0_29 = arith.constant 0 : index
    %c0_30 = arith.constant 0 : index
    %34 = vector.load %arg7[%c0_29, %c0_30] : memref<128x128xf32, #tpu.memory_space<vmem>>, vector<128x128xf32>
    %cst_31 = arith.constant dense<0.000000e+00> : vector<8x128xf32>
    %35 = tpu.matmul %33, %34, %cst_31 {dimension_numbers = #tpu.dot_dimension_numbers<[1], [0], [0], [1], [0, 0, 1, 1], [], []>} : vector<8x128xf32>, vector<128x128xf32>, vector<8x128xf32> -> vector<8x128xf32>
    %c0_32 = arith.constant 0 : index
    %c0_33 = arith.constant 0 : index
    %36 = vector.load %arg17[%c0_32, %c0_33] : memref<1x128xf32, #tpu.memory_space<vmem>>, vector<1x128xf32>
    %37 = vector.broadcast %36 : vector<1x128xf32> to vector<8x128xf32>
    %38 = arith.addf %35, %37 : vector<8x128xf32>
    %c0_34 = arith.constant 0 : index
    %c0_35 = arith.constant 0 : index
    %39 = vector.load %arg22[%c0_34, %c0_35] : memref<8x128xf32, #tpu.memory_space<vmem>>, vector<8x128xf32>
    tpu.vector_store %arg22[%c0_34, %c0_35], %38 {strides = array<i32>} : memref<8x128xf32, #tpu.memory_space<vmem>>, vector<8x128xf32>,
    %c0_36 = arith.constant 0 : index
    %c0_37 = arith.constant 0 : index
    %40 = vector.load %arg8[%c0_36, %c0_37] : memref<128x128xf32, #tpu.memory_space<vmem>>, vector<128x128xf32>
    %cst_38 = arith.constant dense<0.000000e+00> : vector<8x128xf32>
    %41 = tpu.matmul %19, %40, %cst_38 {dimension_numbers = #tpu.dot_dimension_numbers<[1], [0], [0], [1], [0, 0, 1, 1], [], []>} : vector<8x128xf32>, vector<128x128xf32>, vector<8x128xf32> -> vector<8x128xf32>
    %c0_39 = arith.constant 0 : index
    %c0_40 = arith.constant 0 : index
    %42 = vector.load %arg9[%c0_39, %c0_40] : memref<128x128xf32, #tpu.memory_space<vmem>>, vector<128x128xf32>
    %cst_41 = arith.constant dense<0.000000e+00> : vector<8x128xf32>
    %43 = tpu.matmul %38, %42, %cst_41 {dimension_numbers = #tpu.dot_dimension_numbers<[1], [0], [0], [1], [0, 0, 1, 1], [], []>} : vector<8x128xf32>, vector<128x128xf32>, vector<8x128xf32> -> vector<8x128xf32>
    %44 = arith.addf %41, %43 : vector<8x128xf32>
    %c0_42 = arith.constant 0 : index
    %c0_43 = arith.constant 0 : index
    %45 = vector.load %arg18[%c0_42, %c0_43] : memref<1x128xf32, #tpu.memory_space<vmem>>, vector<1x128xf32>
    %46 = vector.broadcast %45 : vector<1x128xf32> to vector<8x128xf32>
    %47 = arith.addf %44, %46 : vector<8x128xf32>
    %cst_44 = arith.constant 0.000000e+00 : f32
    %48 = vector.broadcast %cst_44 : f32 to vector<8x128xf32>
    %49 = arith.maximumf %47, %48 : vector<8x128xf32>
    %c0_45 = arith.constant 0 : index
    %c0_46 = arith.constant 0 : index
    %50 = vector.load %arg10[%c0_45, %c0_46] : memref<128x128xf32, #tpu.memory_space<vmem>>, vector<128x128xf32>
    %cst_47 = arith.constant dense<0.000000e+00> : vector<8x128xf32>
    %51 = tpu.matmul %49, %50, %cst_47 {dimension_numbers = #tpu.dot_dimension_numbers<[1], [0], [0], [1], [0, 0, 1, 1], [], []>} : vector<8x128xf32>, vector<128x128xf32>, vector<8x128xf32> -> vector<8x128xf32>
    %c0_48 = arith.constant 0 : index
    %c0_49 = arith.constant 0 : index
    %52 = vector.load %arg19[%c0_48, %c0_49] : memref<1x128xf32, #tpu.memory_space<vmem>>, vector<1x128xf32>
    %53 = vector.broadcast %52 : vector<1x128xf32> to vector<8x128xf32>
    %54 = arith.addf %51, %53 : vector<8x128xf32>
    %cst_50 = arith.constant 0.000000e+00 : f32
    %55 = vector.broadcast %cst_50 : f32 to vector<8x128xf32>
    %56 = arith.maximumf %54, %55 : vector<8x128xf32>
    %c0_51 = arith.constant 0 : index
    %c0_52 = arith.constant 0 : index
    %57 = vector.load %arg11[%c0_51, %c0_52] : memref<128x128xf32, #tpu.memory_space<vmem>>, vector<128x128xf32>
    %cst_53 = arith.constant dense<0.000000e+00> : vector<8x128xf32>
    %58 = tpu.matmul %56, %57, %cst_53 {dimension_numbers = #tpu.dot_dimension_numbers<[1], [0], [0], [1], [0, 0, 1, 1], [], []>} : vector<8x128xf32>, vector<128x128xf32>, vector<8x128xf32> -> vector<8x128xf32>
    %c0_54 = arith.constant 0 : index
    %c0_55 = arith.constant 0 : index
    %59 = vector.load %arg20[%c0_54, %c0_55] : memref<1x128xf32, #tpu.memory_space<vmem>>, vector<1x128xf32>
    %60 = vector.broadcast %59 : vector<1x128xf32> to vector<8x128xf32>
    %61 = arith.addf %58, %60 : vector<8x128xf32>
    %c0_56 = arith.constant 0 : index
    %c0_57 = arith.constant 0 : index
    %62 = vector.load %arg21[%c0_56, %c0_57] : memref<8x128xf32, #tpu.memory_space<vmem>>, vector<8x128xf32>
    tpu.vector_store %arg21[%c0_56, %c0_57], %61 {strides = array<i32>} : memref<8x128xf32, #tpu.memory_space<vmem>>, vector<8x128xf32>,
    %cst_58 = arith.constant 0.000000e+00 : f32
    %63 = vector.broadcast %cst_58 : f32 to vector<8x128xf32>
    %c0_59 = arith.constant 0 : index
    %c0_60 = arith.constant 0 : index
    %64 = vector.load %arg23[%c0_59, %c0_60] : memref<8x128xf32, #tpu.memory_space<vmem>>, vector<8x128xf32>
    tpu.vector_store %arg23[%c0_59, %c0_60], %63 {strides = array<i32>} : memref<8x128xf32, #tpu.memory_space<vmem>>, vector<8x128xf32>,
    %c0_i32 = arith.constant 0 : i32
    %65 = arith.cmpi eq, %arg0, %c0_i32 : i32
    %66 = arith.extui %65 : i1 to i32
    %c0_i32_61 = arith.constant 0 : i32
    %67 = arith.cmpi ne, %66, %c0_i32_61 : i32
    scf.if %67 {
      %c0_62 = arith.constant 0 : index
      %c0_63 = arith.constant 0 : index
      %68 = vector.load %arg8[%c0_62, %c0_63] : memref<128x128xf32, #tpu.memory_space<vmem>>, vector<128x128xf32>
      %69 = arith.mulf %68, %68 : vector<128x128xf32>
      %70 = vector.shape_cast %69 : vector<128x128xf32> to vector<1x128x128xf32>
      %cst_64 = arith.constant dense<0.000000e+00> : vector<1xf32>
      %71 = vector.multi_reduction <add>, %70, %cst_64 [1, 2] : vector<1x128x128xf32> to vector<1xf32>
      %72 = vector.shape_cast %71 : vector<1xf32> to vector<1x1x1xf32>
      %73 = vector.extract %72[0, 0, 0] : f32 from vector<1x1x1xf32>
      %cst_65 = arith.constant 0.000000e+00 : f32
      %74 = arith.addf %cst_65, %73 : f32
      %c0_66 = arith.constant 0 : index
      %c0_67 = arith.constant 0 : index
      %75 = vector.load %arg9[%c0_66, %c0_67] : memref<128x128xf32, #tpu.memory_space<vmem>>, vector<128x128xf32>
      %76 = arith.mulf %75, %75 : vector<128x128xf32>
      %77 = vector.shape_cast %76 : vector<128x128xf32> to vector<1x128x128xf32>
      %cst_68 = arith.constant dense<0.000000e+00> : vector<1xf32>
      %78 = vector.multi_reduction <add>, %77, %cst_68 [1, 2] : vector<1x128x128xf32> to vector<1xf32>
      %79 = vector.shape_cast %78 : vector<1xf32> to vector<1x1x1xf32>
      %80 = vector.extract %79[0, 0, 0] : f32 from vector<1x1x1xf32>
      %cst_69 = arith.constant 0.000000e+00 : f32
      %81 = arith.addf %cst_69, %80 : f32
      %82 = arith.addf %74, %81 : f32
      %83 = math.sqrt %82 : f32
      %c0_70 = arith.constant 0 : index
      %c0_71 = arith.constant 0 : index
      %84 = vector.load %arg2[%c0_70, %c0_71] : memref<128x128xf32, #tpu.memory_space<vmem>>, vector<128x128xf32>
      %85 = arith.mulf %84, %84 : vector<128x128xf32>
      %86 = vector.shape_cast %85 : vector<128x128xf32> to vector<1x128x128xf32>
      %cst_72 = arith.constant dense<0.000000e+00> : vector<1xf32>
      %87 = vector.multi_reduction <add>, %86, %cst_72 [1, 2] : vector<1x128x128xf32> to vector<1xf32>
      %88 = vector.shape_cast %87 : vector<1xf32> to vector<1x1x1xf32>
      %89 = vector.extract %88[0, 0, 0] : f32 from vector<1x1x1xf32>
      %cst_73 = arith.constant 0.000000e+00 : f32
      %90 = arith.addf %cst_73, %89 : f32
      %91 = math.sqrt %90 : f32
      %92 = arith.addf %83, %91 : f32
      %c0_74 = arith.constant 0 : index
      %c0_75 = arith.constant 0 : index
      %93 = vector.load %arg3[%c0_74, %c0_75] : memref<128x128xf32, #tpu.memory_space<vmem>>, vector<128x128xf32>
      %94 = arith.mulf %93, %93 : vector<128x128xf32>
      %95 = vector.shape_cast %94 : vector<128x128xf32> to vector<1x128x128xf32>
      %cst_76 = arith.constant dense<0.000000e+00> : vector<1xf32>
      %96 = vector.multi_reduction <add>, %95, %cst_76 [1, 2] : vector<1x128x128xf32> to vector<1xf32>
      %97 = vector.shape_cast %96 : vector<1xf32> to vector<1x1x1xf32>
      %98 = vector.extract %97[0, 0, 0] : f32 from vector<1x1x1xf32>
      %cst_77 = arith.constant 0.000000e+00 : f32
      %99 = arith.addf %cst_77, %98 : f32
      %100 = math.sqrt %99 : f32
      %101 = arith.addf %92, %100 : f32
      %c0_78 = arith.constant 0 : index
      %c0_79 = arith.constant 0 : index
      %102 = vector.load %arg4[%c0_78, %c0_79] : memref<128x128xf32, #tpu.memory_space<vmem>>, vector<128x128xf32>
      %103 = arith.mulf %102, %102 : vector<128x128xf32>
      %104 = vector.shape_cast %103 : vector<128x128xf32> to vector<1x128x128xf32>
      %cst_80 = arith.constant dense<0.000000e+00> : vector<1xf32>
      %105 = vector.multi_reduction <add>, %104, %cst_80 [1, 2] : vector<1x128x128xf32> to vector<1xf32>
      %106 = vector.shape_cast %105 : vector<1xf32> to vector<1x1x1xf32>
      %107 = vector.extract %106[0, 0, 0] : f32 from vector<1x1x1xf32>
      %cst_81 = arith.constant 0.000000e+00 : f32
      %108 = arith.addf %cst_81, %107 : f32
      %109 = math.sqrt %108 : f32
      %110 = arith.addf %101, %109 : f32
      %c0_82 = arith.constant 0 : index
      %c0_83 = arith.constant 0 : index
      %111 = vector.load %arg5[%c0_82, %c0_83] : memref<128x128xf32, #tpu.memory_space<vmem>>, vector<128x128xf32>
      %112 = arith.mulf %111, %111 : vector<128x128xf32>
      %113 = vector.shape_cast %112 : vector<128x128xf32> to vector<1x128x128xf32>
      %cst_84 = arith.constant dense<0.000000e+00> : vector<1xf32>
      %114 = vector.multi_reduction <add>, %113, %cst_84 [1, 2] : vector<1x128x128xf32> to vector<1xf32>
      %115 = vector.shape_cast %114 : vector<1xf32> to vector<1x1x1xf32>
      %116 = vector.extract %115[0, 0, 0] : f32 from vector<1x1x1xf32>
      %cst_85 = arith.constant 0.000000e+00 : f32
      %117 = arith.addf %cst_85, %116 : f32
      %118 = math.sqrt %117 : f32
      %119 = arith.addf %110, %118 : f32
      %c0_86 = arith.constant 0 : index
      %c0_87 = arith.constant 0 : index
      %120 = vector.load %arg6[%c0_86, %c0_87] : memref<128x128xf32, #tpu.memory_space<vmem>>, vector<128x128xf32>
      %121 = arith.mulf %120, %120 : vector<128x128xf32>
      %122 = vector.shape_cast %121 : vector<128x128xf32> to vector<1x128x128xf32>
      %cst_88 = arith.constant dense<0.000000e+00> : vector<1xf32>
      %123 = vector.multi_reduction <add>, %122, %cst_88 [1, 2] : vector<1x128x128xf32> to vector<1xf32>
      %124 = vector.shape_cast %123 : vector<1xf32> to vector<1x1x1xf32>
      %125 = vector.extract %124[0, 0, 0] : f32 from vector<1x1x1xf32>
      %cst_89 = arith.constant 0.000000e+00 : f32
      %126 = arith.addf %cst_89, %125 : f32
      %127 = math.sqrt %126 : f32
      %128 = arith.addf %119, %127 : f32
      %c0_90 = arith.constant 0 : index
      %c0_91 = arith.constant 0 : index
      %129 = vector.load %arg7[%c0_90, %c0_91] : memref<128x128xf32, #tpu.memory_space<vmem>>, vector<128x128xf32>
      %130 = arith.mulf %129, %129 : vector<128x128xf32>
      %131 = vector.shape_cast %130 : vector<128x128xf32> to vector<1x128x128xf32>
      %cst_92 = arith.constant dense<0.000000e+00> : vector<1xf32>
      %132 = vector.multi_reduction <add>, %131, %cst_92 [1, 2] : vector<1x128x128xf32> to vector<1xf32>
      %133 = vector.shape_cast %132 : vector<1xf32> to vector<1x1x1xf32>
      %134 = vector.extract %133[0, 0, 0] : f32 from vector<1x1x1xf32>
      %cst_93 = arith.constant 0.000000e+00 : f32
      %135 = arith.addf %cst_93, %134 : f32
      %136 = math.sqrt %135 : f32
      %137 = arith.addf %128, %136 : f32
      %c0_94 = arith.constant 0 : index
      %c0_95 = arith.constant 0 : index
      %138 = vector.load %arg10[%c0_94, %c0_95] : memref<128x128xf32, #tpu.memory_space<vmem>>, vector<128x128xf32>
      %139 = arith.mulf %138, %138 : vector<128x128xf32>
      %140 = vector.shape_cast %139 : vector<128x128xf32> to vector<1x128x128xf32>
      %cst_96 = arith.constant dense<0.000000e+00> : vector<1xf32>
      %141 = vector.multi_reduction <add>, %140, %cst_96 [1, 2] : vector<1x128x128xf32> to vector<1xf32>
      %142 = vector.shape_cast %141 : vector<1xf32> to vector<1x1x1xf32>
      %143 = vector.extract %142[0, 0, 0] : f32 from vector<1x1x1xf32>
      %cst_97 = arith.constant 0.000000e+00 : f32
      %144 = arith.addf %cst_97, %143 : f32
      %145 = math.sqrt %144 : f32
      %146 = arith.addf %137, %145 : f32
      %c0_98 = arith.constant 0 : index
      %c0_99 = arith.constant 0 : index
      %147 = vector.load %arg11[%c0_98, %c0_99] : memref<128x128xf32, #tpu.memory_space<vmem>>, vector<128x128xf32>
      %148 = arith.mulf %147, %147 : vector<128x128xf32>
      %149 = vector.shape_cast %148 : vector<128x128xf32> to vector<1x128x128xf32>
      %cst_100 = arith.constant dense<0.000000e+00> : vector<1xf32>
      %150 = vector.multi_reduction <add>, %149, %cst_100 [1, 2] : vector<1x128x128xf32> to vector<1xf32>
      %151 = vector.shape_cast %150 : vector<1xf32> to vector<1x1x1xf32>
      %152 = vector.extract %151[0, 0, 0] : f32 from vector<1x1x1xf32>
      %cst_101 = arith.constant 0.000000e+00 : f32
      %153 = arith.addf %cst_101, %152 : f32
      %154 = math.sqrt %153 : f32
      %155 = arith.addf %146, %154 : f32
      %c0_102 = arith.constant 0 : index
      %c0_103 = arith.constant 0 : index
      %156 = vector.load %arg12[%c0_102, %c0_103] : memref<1x128xf32, #tpu.memory_space<vmem>>, vector<1x128xf32>
      %157 = arith.mulf %156, %156 : vector<1x128xf32>
      %158 = vector.shape_cast %157 : vector<1x128xf32> to vector<1x1x128xf32>
      %cst_104 = arith.constant dense<0.000000e+00> : vector<1xf32>
      %159 = vector.multi_reduction <add>, %158, %cst_104 [1, 2] : vector<1x1x128xf32> to vector<1xf32>
      %160 = vector.shape_cast %159 : vector<1xf32> to vector<1x1x1xf32>
      %161 = vector.extract %160[0, 0, 0] : f32 from vector<1x1x1xf32>
      %cst_105 = arith.constant 0.000000e+00 : f32
      %162 = arith.addf %cst_105, %161 : f32
      %163 = math.sqrt %162 : f32
      %164 = arith.addf %155, %163 : f32
      %c0_106 = arith.constant 0 : index
      %c0_107 = arith.constant 0 : index
      %165 = vector.load %arg13[%c0_106, %c0_107] : memref<1x128xf32, #tpu.memory_space<vmem>>, vector<1x128xf32>
      %166 = arith.mulf %165, %165 : vector<1x128xf32>
      %167 = vector.shape_cast %166 : vector<1x128xf32> to vector<1x1x128xf32>
      %cst_108 = arith.constant dense<0.000000e+00> : vector<1xf32>
      %168 = vector.multi_reduction <add>, %167, %cst_108 [1, 2] : vector<1x1x128xf32> to vector<1xf32>
      %169 = vector.shape_cast %168 : vector<1xf32> to vector<1x1x1xf32>
      %170 = vector.extract %169[0, 0, 0] : f32 from vector<1x1x1xf32>
      %cst_109 = arith.constant 0.000000e+00 : f32
      %171 = arith.addf %cst_109, %170 : f32
      %172 = math.sqrt %171 : f32
      %173 = arith.addf %164, %172 : f32
      %c0_110 = arith.constant 0 : index
      %c0_111 = arith.constant 0 : index
      %174 = vector.load %arg14[%c0_110, %c0_111] : memref<1x128xf32, #tpu.memory_space<vmem>>, vector<1x128xf32>
      %175 = arith.mulf %174, %174 : vector<1x128xf32>
      %176 = vector.shape_cast %175 : vector<1x128xf32> to vector<1x1x128xf32>
      %cst_112 = arith.constant dense<0.000000e+00> : vector<1xf32>
      %177 = vector.multi_reduction <add>, %176, %cst_112 [1, 2] : vector<1x1x128xf32> to vector<1xf32>
      %178 = vector.shape_cast %177 : vector<1xf32> to vector<1x1x1xf32>
      %179 = vector.extract %178[0, 0, 0] : f32 from vector<1x1x1xf32>
      %cst_113 = arith.constant 0.000000e+00 : f32
      %180 = arith.addf %cst_113, %179 : f32
      %181 = math.sqrt %180 : f32
      %182 = arith.addf %173, %181 : f32
      %c0_114 = arith.constant 0 : index
      %c0_115 = arith.constant 0 : index
      %183 = vector.load %arg15[%c0_114, %c0_115] : memref<1x128xf32, #tpu.memory_space<vmem>>, vector<1x128xf32>
      %184 = arith.mulf %183, %183 : vector<1x128xf32>
      %185 = vector.shape_cast %184 : vector<1x128xf32> to vector<1x1x128xf32>
      %cst_116 = arith.constant dense<0.000000e+00> : vector<1xf32>
      %186 = vector.multi_reduction <add>, %185, %cst_116 [1, 2] : vector<1x1x128xf32> to vector<1xf32>
      %187 = vector.shape_cast %186 : vector<1xf32> to vector<1x1x1xf32>
      %188 = vector.extract %187[0, 0, 0] : f32 from vector<1x1x1xf32>
      %cst_117 = arith.constant 0.000000e+00 : f32
      %189 = arith.addf %cst_117, %188 : f32
      %190 = math.sqrt %189 : f32
      %191 = arith.addf %182, %190 : f32
      %c0_118 = arith.constant 0 : index
      %c0_119 = arith.constant 0 : index
      %192 = vector.load %arg16[%c0_118, %c0_119] : memref<1x128xf32, #tpu.memory_space<vmem>>, vector<1x128xf32>
      %193 = arith.mulf %192, %192 : vector<1x128xf32>
      %194 = vector.shape_cast %193 : vector<1x128xf32> to vector<1x1x128xf32>
      %cst_120 = arith.constant dense<0.000000e+00> : vector<1xf32>
      %195 = vector.multi_reduction <add>, %194, %cst_120 [1, 2] : vector<1x1x128xf32> to vector<1xf32>
      %196 = vector.shape_cast %195 : vector<1xf32> to vector<1x1x1xf32>
      %197 = vector.extract %196[0, 0, 0] : f32 from vector<1x1x1xf32>
      %cst_121 = arith.constant 0.000000e+00 : f32
      %198 = arith.addf %cst_121, %197 : f32
      %199 = math.sqrt %198 : f32
      %200 = arith.addf %191, %199 : f32
      %c0_122 = arith.constant 0 : index
      %c0_123 = arith.constant 0 : index
      %201 = vector.load %arg17[%c0_122, %c0_123] : memref<1x128xf32, #tpu.memory_space<vmem>>, vector<1x128xf32>
      %202 = arith.mulf %201, %201 : vector<1x128xf32>
      %203 = vector.shape_cast %202 : vector<1x128xf32> to vector<1x1x128xf32>
      %cst_124 = arith.constant dense<0.000000e+00> : vector<1xf32>
      %204 = vector.multi_reduction <add>, %203, %cst_124 [1, 2] : vector<1x1x128xf32> to vector<1xf32>
      %205 = vector.shape_cast %204 : vector<1xf32> to vector<1x1x1xf32>
      %206 = vector.extract %205[0, 0, 0] : f32 from vector<1x1x1xf32>
      %cst_125 = arith.constant 0.000000e+00 : f32
      %207 = arith.addf %cst_125, %206 : f32
      %208 = math.sqrt %207 : f32
      %209 = arith.addf %200, %208 : f32
      %c0_126 = arith.constant 0 : index
      %c0_127 = arith.constant 0 : index
      %210 = vector.load %arg18[%c0_126, %c0_127] : memref<1x128xf32, #tpu.memory_space<vmem>>, vector<1x128xf32>
      %211 = arith.mulf %210, %210 : vector<1x128xf32>
      %212 = vector.shape_cast %211 : vector<1x128xf32> to vector<1x1x128xf32>
      %cst_128 = arith.constant dense<0.000000e+00> : vector<1xf32>
      %213 = vector.multi_reduction <add>, %212, %cst_128 [1, 2] : vector<1x1x128xf32> to vector<1xf32>
      %214 = vector.shape_cast %213 : vector<1xf32> to vector<1x1x1xf32>
      %215 = vector.extract %214[0, 0, 0] : f32 from vector<1x1x1xf32>
      %cst_129 = arith.constant 0.000000e+00 : f32
      %216 = arith.addf %cst_129, %215 : f32
      %217 = math.sqrt %216 : f32
      %218 = arith.addf %209, %217 : f32
      %c0_130 = arith.constant 0 : index
      %c0_131 = arith.constant 0 : index
      %219 = vector.load %arg19[%c0_130, %c0_131] : memref<1x128xf32, #tpu.memory_space<vmem>>, vector<1x128xf32>
      %220 = arith.mulf %219, %219 : vector<1x128xf32>
      %221 = vector.shape_cast %220 : vector<1x128xf32> to vector<1x1x128xf32>
      %cst_132 = arith.constant dense<0.000000e+00> : vector<1xf32>
      %222 = vector.multi_reduction <add>, %221, %cst_132 [1, 2] : vector<1x1x128xf32> to vector<1xf32>
      %223 = vector.shape_cast %222 : vector<1xf32> to vector<1x1x1xf32>
      %224 = vector.extract %223[0, 0, 0] : f32 from vector<1x1x1xf32>
      %cst_133 = arith.constant 0.000000e+00 : f32
      %225 = arith.addf %cst_133, %224 : f32
      %226 = math.sqrt %225 : f32
      %227 = arith.addf %218, %226 : f32
      %c0_134 = arith.constant 0 : index
      %c0_135 = arith.constant 0 : index
      %228 = vector.load %arg20[%c0_134, %c0_135] : memref<1x128xf32, #tpu.memory_space<vmem>>, vector<1x128xf32>
      %229 = arith.mulf %228, %228 : vector<1x128xf32>
      %230 = vector.shape_cast %229 : vector<1x128xf32> to vector<1x1x128xf32>
      %cst_136 = arith.constant dense<0.000000e+00> : vector<1xf32>
      %231 = vector.multi_reduction <add>, %230, %cst_136 [1, 2] : vector<1x1x128xf32> to vector<1xf32>
      %232 = vector.shape_cast %231 : vector<1xf32> to vector<1x1x1xf32>
      %233 = vector.extract %232[0, 0, 0] : f32 from vector<1x1x1xf32>
      %cst_137 = arith.constant 0.000000e+00 : f32
      %234 = arith.addf %cst_137, %233 : f32
      %235 = math.sqrt %234 : f32
      %236 = arith.addf %227, %235 : f32
      %cst_138 = arith.constant 0.000000e+00 : f32
      %237 = vector.broadcast %cst_138 : f32 to vector<8x128xf32>
      %238 = vector.broadcast %236 : f32 to vector<8x128xf32>
      %239 = arith.addf %237, %238 : vector<8x128xf32>
      %c0_139 = arith.constant 0 : index
      %c0_140 = arith.constant 0 : index
      %240 = vector.load %arg23[%c0_139, %c0_140] : memref<8x128xf32, #tpu.memory_space<vmem>>, vector<8x128xf32>
      tpu.vector_store %arg23[%c0_139, %c0_140], %239 {strides = array<i32>} : memref<8x128xf32, #tpu.memory_space<vmem>>, vector<8x128xf32>,
    } else {
    }
    return
  }
  func.func @transform_0(%arg0: i32) -> (i32, i32) {
    %c0_i32 = arith.constant 0 : i32
    %c0_i32_0 = arith.constant 0 : i32
    return %arg0, %c0_i32 : i32, i32
  }
  func.func @transform_1(%arg0: i32) -> (i32, i32) {
    %c0_i32 = arith.constant 0 : i32
    %c0_i32_0 = arith.constant 0 : i32
    %c0_i32_1 = arith.constant 0 : i32
    return %c0_i32, %c0_i32_0 : i32, i32
  }
  func.func @transform_2(%arg0: i32) -> (i32, i32) {
    %c0_i32 = arith.constant 0 : i32
    %c0_i32_0 = arith.constant 0 : i32
    %c0_i32_1 = arith.constant 0 : i32
    return %c0_i32, %c0_i32_0 : i32, i32
  }
  func.func @transform_3(%arg0: i32) -> (i32, i32) {
    %c0_i32 = arith.constant 0 : i32
    %c0_i32_0 = arith.constant 0 : i32
    %c0_i32_1 = arith.constant 0 : i32
    return %c0_i32, %c0_i32_0 : i32, i32
  }
  func.func @transform_4(%arg0: i32) -> (i32, i32) {
    %c0_i32 = arith.constant 0 : i32
    %c0_i32_0 = arith.constant 0 : i32
    %c0_i32_1 = arith.constant 0 : i32
    return %c0_i32, %c0_i32_0 : i32, i32
  }
  func.func @transform_5(%arg0: i32) -> (i32, i32) {
    %c0_i32 = arith.constant 0 : i32
    %c0_i32_0 = arith.constant 0 : i32
    %c0_i32_1 = arith.constant 0 : i32
    return %c0_i32, %c0_i32_0 : i32, i32
  }
  func.func @transform_6(%arg0: i32) -> (i32, i32) {
    %c0_i32 = arith.constant 0 : i32
    %c0_i32_0 = arith.constant 0 : i32
    %c0_i32_1 = arith.constant 0 : i32
    return %c0_i32, %c0_i32_0 : i32, i32
  }
  func.func @transform_7(%arg0: i32) -> (i32, i32) {
    %c0_i32 = arith.constant 0 : i32
    %c0_i32_0 = arith.constant 0 : i32
    %c0_i32_1 = arith.constant 0 : i32
    return %c0_i32, %c0_i32_0 : i32, i32
  }
  func.func @transform_8(%arg0: i32) -> (i32, i32) {
    %c0_i32 = arith.constant 0 : i32
    %c0_i32_0 = arith.constant 0 : i32
    %c0_i32_1 = arith.constant 0 : i32
    return %c0_i32, %c0_i32_0 : i32, i32
  }
  func.func @transform_9(%arg0: i32) -> (i32, i32) {
    %c0_i32 = arith.constant 0 : i32
    %c0_i32_0 = arith.constant 0 : i32
    %c0_i32_1 = arith.constant 0 : i32
    return %c0_i32, %c0_i32_0 : i32, i32
  }
  func.func @transform_10(%arg0: i32) -> (i32, i32) {
    %c0_i32 = arith.constant 0 : i32
    %c0_i32_0 = arith.constant 0 : i32
    %c0_i32_1 = arith.constant 0 : i32
    return %c0_i32, %c0_i32_0 : i32, i32
  }
  func.func @transform_11(%arg0: i32) -> (i32, i32) {
    %c0_i32 = arith.constant 0 : i32
    %c0_i32_0 = arith.constant 0 : i32
    %c0_i32_1 = arith.constant 0 : i32
    return %c0_i32, %c0_i32_0 : i32, i32
  }
  func.func @transform_12(%arg0: i32) -> (i32, i32) {
    %c0_i32 = arith.constant 0 : i32
    %c0_i32_0 = arith.constant 0 : i32
    %c0_i32_1 = arith.constant 0 : i32
    return %c0_i32, %c0_i32_0 : i32, i32
  }
  func.func @transform_13(%arg0: i32) -> (i32, i32) {
    %c0_i32 = arith.constant 0 : i32
    %c0_i32_0 = arith.constant 0 : i32
    %c0_i32_1 = arith.constant 0 : i32
    return %c0_i32, %c0_i32_0 : i32, i32
  }
  func.func @transform_14(%arg0: i32) -> (i32, i32) {
    %c0_i32 = arith.constant 0 : i32
    %c0_i32_0 = arith.constant 0 : i32
    %c0_i32_1 = arith.constant 0 : i32
    return %c0_i32, %c0_i32_0 : i32, i32
  }
  func.func @transform_15(%arg0: i32) -> (i32, i32) {
    %c0_i32 = arith.constant 0 : i32
    %c0_i32_0 = arith.constant 0 : i32
    %c0_i32_1 = arith.constant 0 : i32
    return %c0_i32, %c0_i32_0 : i32, i32
  }
  func.func @transform_16(%arg0: i32) -> (i32, i32) {
    %c0_i32 = arith.constant 0 : i32
    %c0_i32_0 = arith.constant 0 : i32
    %c0_i32_1 = arith.constant 0 : i32
    return %c0_i32, %c0_i32_0 : i32, i32
  }
  func.func @transform_17(%arg0: i32) -> (i32, i32) {
    %c0_i32 = arith.constant 0 : i32
    %c0_i32_0 = arith.constant 0 : i32
    %c0_i32_1 = arith.constant 0 : i32
    return %c0_i32, %c0_i32_0 : i32, i32
  }
  func.func @transform_18(%arg0: i32) -> (i32, i32) {
    %c0_i32 = arith.constant 0 : i32
    %c0_i32_0 = arith.constant 0 : i32
    %c0_i32_1 = arith.constant 0 : i32
    return %c0_i32, %c0_i32_0 : i32, i32
  }
  func.func @transform_19(%arg0: i32) -> (i32, i32) {
    %c0_i32 = arith.constant 0 : i32
    %c0_i32_0 = arith.constant 0 : i32
    %c0_i32_1 = arith.constant 0 : i32
    return %c0_i32, %c0_i32_0 : i32, i32
  }
  func.func @transform_20(%arg0: i32) -> (i32, i32) {
    %c0_i32 = arith.constant 0 : i32
    %c0_i32_0 = arith.constant 0 : i32
    return %arg0, %c0_i32 : i32, i32
  }
  func.func @transform_21(%arg0: i32) -> (i32, i32) {
    %c0_i32 = arith.constant 0 : i32
    %c0_i32_0 = arith.constant 0 : i32
    return %arg0, %c0_i32 : i32, i32
  }
  func.func @transform_22(%arg0: i32) -> (i32, i32) {
    %c0_i32 = arith.constant 0 : i32
    %c0_i32_0 = arith.constant 0 : i32
    return %arg0, %c0_i32 : i32, i32
  }
}

</mosaic_0001>

<llo_original>
// kernel: autoencoder_forward.1
$region0: #{autoencoder_forward.1}
  #allocation0 [shape = 'u32[]', space=smem, size = 0x4, offset = 0x4, fixed_abs, tag = 'smem constant byte address 0x4 - core index']
  #allocation1 [shape = 'u32[144,128]{1,0:T(1,128)}', space=vmem, size = 0x12000, scoped, tag = 'internal scratch']
  %s0 = inlined_call_operand.vmem [shape: f32[8,128], index: 0, kind: input, shape index: {}]
  %s1 = inlined_call_operand.vmem [shape: f32[128,128], index: 1, kind: input, shape index: {}]
  %s2 = inlined_call_operand.vmem [shape: f32[128,128], index: 2, kind: input, shape index: {}]
  %s3 = inlined_call_operand.vmem [shape: f32[128,128], index: 3, kind: input, shape index: {}]
  %s4 = inlined_call_operand.vmem [shape: f32[128,128], index: 4, kind: input, shape index: {}]
  %s5 = inlined_call_operand.vmem [shape: f32[128,128], index: 5, kind: input, shape index: {}]
  %s6 = inlined_call_operand.vmem [shape: f32[128,128], index: 6, kind: input, shape index: {}]
  %s7 = inlined_call_operand.vmem [shape: f32[128,128], index: 7, kind: input, shape index: {}]
  %s8 = inlined_call_operand.vmem [shape: f32[128,128], index: 8, kind: input, shape index: {}]
  %s9 = inlined_call_operand.vmem [shape: f32[128,128], index: 9, kind: input, shape index: {}]
  %s10 = inlined_call_operand.vmem [shape: f32[128,128], index: 10, kind: input, shape index: {}]
  %s11 = inlined_call_operand.vmem [shape: f32[1,128], index: 11, kind: input, shape index: {}]
  %s12 = inlined_call_operand.vmem [shape: f32[1,128], index: 12, kind: input, shape index: {}]
  %s13 = inlined_call_operand.vmem [shape: f32[1,128], index: 13, kind: input, shape index: {}]
  %s14 = inlined_call_operand.vmem [shape: f32[1,128], index: 14, kind: input, shape index: {}]
  %s15 = inlined_call_operand.vmem [shape: f32[1,128], index: 15, kind: input, shape index: {}]
  %s16 = inlined_call_operand.vmem [shape: f32[1,128], index: 16, kind: input, shape index: {}]
  %s17 = inlined_call_operand.vmem [shape: f32[1,128], index: 17, kind: input, shape index: {}]
  %s18 = inlined_call_operand.vmem [shape: f32[1,128], index: 18, kind: input, shape index: {}]
  %s19 = inlined_call_operand.vmem [shape: f32[1,128], index: 19, kind: input, shape index: {}]
  %s20 = inlined_call_operand.hbm [shape: f32[8,128], index: 20, kind: output, shape index: {0}]
  %s21 = inlined_call_operand.hbm [shape: f32[8,128], index: 21, kind: output, shape index: {1}]
  %s22 = inlined_call_operand.vmem [shape: f32[8,128], index: 22, kind: output, shape index: {2}]
  %23 = xla_tuple %s20, %s21, %s22
  %s24 = sld [smem:[#allocation0]]
  $region110: #{autoencoder_forward.1} parent=0
    _
  %s26 = ssub.s32 1, %s24
  %s27 = scalar_select 0, %s26, %s24
  $region1: #{autoencoder_forward.1} parent=0
    #allocation2 [shape = 'u8[4096]{0}', space=vmem, size = 0x1000, scoped, tag = 'output window, operand 0, single buffered']
    #allocation3 [shape = 's32[1]{0}', space=sflag, size = 0x4, scoped, tag = 'scoped memory for autoencoder_forward.1']
    #allocation4 [shape = 'u8[4096]{0}', space=vmem, size = 0x1000, scoped, tag = 'output window, operand 1, single buffered']
    #allocation5 [shape = 's32[1]{0}', space=sflag, size = 0x4, scoped, tag = 'scoped memory for autoencoder_forward.1']
    %28 = vsyncpa [#allocation3], 0
    %29 = vsyncpa [#allocation5], 0
    // Predicated region
    $region2: #{autoencoder_forward.1} parent=1 // pred_check
      _
    $region3: #{autoencoder_forward.1} parent=1 // pred_check_branch
      %31 = sbr.rel (0) target = $region5
    $region4: #{autoencoder_forward.1} parent=1 // pred_region
      _
    $region5: #{autoencoder_forward.1} parent=1 // pred_fallthru
      _
    // Predicated region
    $region6: #{autoencoder_forward.1} parent=1 // pred_check
      _
    $region7: #{autoencoder_forward.1} parent=1 // pred_check_branch
      %33 = sbr.rel (0) target = $region9
    $region8: #{autoencoder_forward.1} parent=1 // pred_region
      _
    $region9: #{autoencoder_forward.1} parent=1 // pred_fallthru
      _
    // Predicated region
    $region10: #{autoencoder_forward.1} parent=1 // pred_check
      _
    $region11: #{autoencoder_forward.1} parent=1 // pred_check_branch
      %35 = sbr.rel (0) target = $region13
    $region12: #{autoencoder_forward.1} parent=1 // pred_region
      _
    $region13: #{autoencoder_forward.1} parent=1 // pred_fallthru
      _
    // Predicated region
    $region14: #{autoencoder_forward.1} parent=1 // pred_check
      _
    $region15: #{autoencoder_forward.1} parent=1 // pred_check_branch
      %37 = sbr.rel (0) target = $region17
    $region16: #{autoencoder_forward.1} parent=1 // pred_region
      _
    $region17: #{autoencoder_forward.1} parent=1 // pred_fallthru
      _
    // Predicated region
    $region18: #{autoencoder_forward.1} parent=1 // pred_check
      _
    $region19: #{autoencoder_forward.1} parent=1 // pred_check_branch
      %39 = sbr.rel (0) target = $region21
    $region20: #{autoencoder_forward.1} parent=1 // pred_region
      _
    $region21: #{autoencoder_forward.1} parent=1 // pred_fallthru
      _
    // Predicated region
    $region22: #{autoencoder_forward.1} parent=1 // pred_check
      _
    $region23: #{autoencoder_forward.1} parent=1 // pred_check_branch
      %41 = sbr.rel (0) target = $region25
    $region24: #{autoencoder_forward.1} parent=1 // pred_region
      _
    $region25: #{autoencoder_forward.1} parent=1 // pred_fallthru
      _
    // Predicated region
    $region26: #{autoencoder_forward.1} parent=1 // pred_check
      _
    $region27: #{autoencoder_forward.1} parent=1 // pred_check_branch
      %43 = sbr.rel (0) target = $region29
    $region28: #{autoencoder_forward.1} parent=1 // pred_region
      _
    $region29: #{autoencoder_forward.1} parent=1 // pred_fallthru
      _
    // Predicated region
    $region30: #{autoencoder_forward.1} parent=1 // pred_check
      _
    $region31: #{autoencoder_forward.1} parent=1 // pred_check_branch
      %45 = sbr.rel (0) target = $region33
    $region32: #{autoencoder_forward.1} parent=1 // pred_region
      _
    $region33: #{autoencoder_forward.1} parent=1 // pred_fallthru
      _
    // Predicated region
    $region34: #{autoencoder_forward.1} parent=1 // pred_check
      _
    $region35: #{autoencoder_forward.1} parent=1 // pred_check_branch
      %47 = sbr.rel (0) target = $region37
    $region36: #{autoencoder_forward.1} parent=1 // pred_region
      _
    $region37: #{autoencoder_forward.1} parent=1 // pred_fallthru
      _
    // Predicated region
    $region38: #{autoencoder_forward.1} parent=1 // pred_check
      _
    $region39: #{autoencoder_forward.1} parent=1 // pred_check_branch
      %49 = sbr.rel (0) target = $region41
    $region40: #{autoencoder_forward.1} parent=1 // pred_region
      _
    $region41: #{autoencoder_forward.1} parent=1 // pred_fallthru
      _
    // Predicated region
    $region42: #{autoencoder_forward.1} parent=1 // pred_check
      _
    $region43: #{autoencoder_forward.1} parent=1 // pred_check_branch
      %51 = sbr.rel (0) target = $region45
    $region44: #{autoencoder_forward.1} parent=1 // pred_region
      _
    $region45: #{autoencoder_forward.1} parent=1 // pred_fallthru
      _
    // Predicated region
    $region46: #{autoencoder_forward.1} parent=1 // pred_check
      _
    $region47: #{autoencoder_forward.1} parent=1 // pred_check_branch
      %53 = sbr.rel (0) target = $region49
    $region48: #{autoencoder_forward.1} parent=1 // pred_region
      _
    $region49: #{autoencoder_forward.1} parent=1 // pred_fallthru
      _
    // Predicated region
    $region50: #{autoencoder_forward.1} parent=1 // pred_check
      _
    $region51: #{autoencoder_forward.1} parent=1 // pred_check_branch
      %55 = sbr.rel (0) target = $region53
    $region52: #{autoencoder_forward.1} parent=1 // pred_region
      _
    $region53: #{autoencoder_forward.1} parent=1 // pred_fallthru
      _
    // Predicated region
    $region54: #{autoencoder_forward.1} parent=1 // pred_check
      _
    $region55: #{autoencoder_forward.1} parent=1 // pred_check_branch
      %57 = sbr.rel (0) target = $region57
    $region56: #{autoencoder_forward.1} parent=1 // pred_region
      _
    $region57: #{autoencoder_forward.1} parent=1 // pred_fallthru
      _
    // Predicated region
    $region58: #{autoencoder_forward.1} parent=1 // pred_check
      _
    $region59: #{autoencoder_forward.1} parent=1 // pred_check_branch
      %59 = sbr.rel (0) target = $region61
    $region60: #{autoencoder_forward.1} parent=1 // pred_region
      _
    $region61: #{autoencoder_forward.1} parent=1 // pred_fallthru
      _
    // Predicated region
    $region62: #{autoencoder_forward.1} parent=1 // pred_check
      _
    $region63: #{autoencoder_forward.1} parent=1 // pred_check_branch
      %61 = sbr.rel (0) target = $region65
    $region64: #{autoencoder_forward.1} parent=1 // pred_region
      _
    $region65: #{autoencoder_forward.1} parent=1 // pred_fallthru
      _
    // Predicated region
    $region66: #{autoencoder_forward.1} parent=1 // pred_check
      _
    $region67: #{autoencoder_forward.1} parent=1 // pred_check_branch
      %63 = sbr.rel (0) target = $region69
    $region68: #{autoencoder_forward.1} parent=1 // pred_region
      _
    $region69: #{autoencoder_forward.1} parent=1 // pred_fallthru
      _
    // Predicated region
    $region70: #{autoencoder_forward.1} parent=1 // pred_check
      _
    $region71: #{autoencoder_forward.1} parent=1 // pred_check_branch
      %65 = sbr.rel (0) target = $region73
    $region72: #{autoencoder_forward.1} parent=1 // pred_region
      _
    $region73: #{autoencoder_forward.1} parent=1 // pred_fallthru
      _
    // Predicated region
    $region74: #{autoencoder_forward.1} parent=1 // pred_check
      _
    $region75: #{autoencoder_forward.1} parent=1 // pred_check_branch
      %67 = sbr.rel (0) target = $region77
    $region76: #{autoencoder_forward.1} parent=1 // pred_region
      _
    $region77: #{autoencoder_forward.1} parent=1 // pred_fallthru
      _
    // Predicated region
    $region78: #{autoencoder_forward.1} parent=1 // pred_check
      _
    $region79: #{autoencoder_forward.1} parent=1 // pred_check_branch
      %69 = sbr.rel (0) target = $region81
    $region80: #{autoencoder_forward.1} parent=1 // pred_region
      _
    $region81: #{autoencoder_forward.1} parent=1 // pred_fallthru
      _
    %v70 = vld [vmem:[%s0] sm:$0xff]
    %v71 = vld [vmem:[%s1] sm:$0xff]
    %v72 = vld [vmem:[%s1 + $0x8] sm:$0xff]
    %v73 = vld [vmem:[%s1 + $0x10] sm:$0xff]
    %v74 = vld [vmem:[%s1 + $0x18] sm:$0xff]
    %v75 = vld [vmem:[%s1 + $0x20] sm:$0xff]
    %v76 = vld [vmem:[%s1 + $0x28] sm:$0xff]
    %v77 = vld [vmem:[%s1 + $0x30] sm:$0xff]
    %v78 = vld [vmem:[%s1 + $0x38] sm:$0xff]
    %v79 = vld [vmem:[%s1 + $0x40] sm:$0xff]
    %v80 = vld [vmem:[%s1 + $0x48] sm:$0xff]
    %v81 = vld [vmem:[%s1 + $0x50] sm:$0xff]
    %v82 = vld [vmem:[%s1 + $0x58] sm:$0xff]
    %v83 = vld [vmem:[%s1 + $0x60] sm:$0xff]
    %v84 = vld [vmem:[%s1 + $0x68] sm:$0xff]
    %v85 = vld [vmem:[%s1 + $0x70] sm:$0xff]
    %v86 = vld [vmem:[%s1 + $0x78] sm:$0xff]
    %v87 = vld [vmem:[%s11] sm:$0x1]
    %v89 = vlaneseq
    %v90 = vshrl.u32 %v89, 7
    %v91 = vsub.s32 0, %v90
    %v92 = vrot.slane %v87, %v91
    %94 = vmatprep.subr.mxu0 0.0
    %95 = vmatpush1.msra.mxu0 %v71
    %96 = vmatprep.subr.mxu0 0.0
    %97 = vmatpush1.msra.mxu0 %v72
    %98 = vmatprep.subr.mxu0 0.0
    %99 = vmatpush1.msra.mxu0 %v73
    %100 = vmatprep.subr.mxu0 0.0
    %101 = vmatpush1.msra.mxu0 %v74
    %102 = vmatprep.subr.mxu0 0.0
    %103 = vmatpush1.msra.mxu0 %v75
    %104 = vmatprep.subr.mxu0 0.0
    %105 = vmatpush1.msra.mxu0 %v76
    %106 = vmatprep.subr.mxu0 0.0
    %107 = vmatpush1.msra.mxu0 %v77
    %108 = vmatprep.subr.mxu0 0.0
    %109 = vmatpush1.msra.mxu0 %v78
    %110 = vmatprep.subr.mxu0 0.0
    %111 = vmatpush1.msra.mxu0 %v79
    %112 = vmatprep.subr.mxu0 0.0
    %113 = vmatpush1.msra.mxu0 %v80
    %114 = vmatprep.subr.mxu0 0.0
    %115 = vmatpush1.msra.mxu0 %v81
    %116 = vmatprep.subr.mxu0 0.0
    %117 = vmatpush1.msra.mxu0 %v82
    %118 = vmatprep.subr.mxu0 0.0
    %119 = vmatpush1.msra.mxu0 %v83
    %120 = vmatprep.subr.mxu0 0.0
    %121 = vmatpush1.msra.mxu0 %v84
    %122 = vmatprep.subr.mxu0 0.0
    %123 = vmatpush1.msra.mxu0 %v85
    %124 = vmatprep.subr.mxu0 0.0
    %125 = vmatpush1.msra.mxu0 %v86
    %126 = vmatprep.subr.mxu0 0.0
    %127 = vmatpush1.msra.mxu0 0.0
    %128 = vmatprep.subr.mxu0 0.0
    %129 = vmatpush1.msra.mxu0 0.0
    %130 = vmatprep.subr.mxu0 0.0
    %131 = vmatpush1.msra.mxu0 0.0
    %132 = vmatprep.subr.mxu0 0.0
    %133 = vmatpush1.msra.mxu0 0.0
    %134 = vmatprep.subr.mxu0 0.0
    %135 = vmatpush1.msra.mxu0 0.0
    %136 = vmatprep.subr.mxu0 0.0
    %137 = vmatpush1.msra.mxu0 0.0
    %138 = vmatprep.subr.mxu0 0.0
    %139 = vmatpush1.msra.mxu0 0.0
    %140 = vmatprep.subr.mxu0 0.0
    %141 = vmatpush1.msra.mxu0 0.0
    %142 = vmatprep.subr.mxu0 0.0
    %143 = vmatpush1.msra.mxu0 0.0
    %144 = vmatprep.subr.mxu0 0.0
    %145 = vmatpush1.msra.mxu0 0.0
    %146 = vmatprep.subr.mxu0 0.0
    %147 = vmatpush1.msra.mxu0 0.0
    %148 = vmatprep.subr.mxu0 0.0
    %149 = vmatpush1.msra.mxu0 0.0
    %150 = vmatprep.subr.mxu0 0.0
    %151 = vmatpush1.msra.mxu0 0.0
    %152 = vmatprep.subr.mxu0 0.0
    %153 = vmatpush1.msra.mxu0 0.0
    %154 = vmatprep.subr.mxu0 0.0
    %155 = vmatpush1.msra.mxu0 0.0
    %156 = vmatprep.subr.mxu0 0.0
    %157 = vmatpush1.msra.mxu0 0.0
    %158 = vmatprep.mubr.f32.mxu0 0.0
    %159 = vmatmul.mubr.f32.gmra.mrb[0].mxu0 %v70
    %v160 = vpop.f32.mrb[0].mxu0
    %v161 = vadd.f32 %v92, %v160
    %v162 = vpop.f32.mrb[0].mxu0
    %163 = vdwg.mxu0
    %v164 = vmax.f32 %v161, 0.0
    %v165 = vld [vmem:[%s2] sm:$0xff]
    %v166 = vld [vmem:[%s2 + $0x8] sm:$0xff]
    %v167 = vld [vmem:[%s2 + $0x10] sm:$0xff]
    %v168 = vld [vmem:[%s2 + $0x18] sm:$0xff]
    %v169 = vld [vmem:[%s2 + $0x20] sm:$0xff]
    %v170 = vld [vmem:[%s2 + $0x28] sm:$0xff]
    %v171 = vld [vmem:[%s2 + $0x30] sm:$0xff]
    %v172 = vld [vmem:[%s2 + $0x38] sm:$0xff]
    %v173 = vld [vmem:[%s2 + $0x40] sm:$0xff]
    %v174 = vld [vmem:[%s2 + $0x48] sm:$0xff]
    %v175 = vld [vmem:[%s2 + $0x50] sm:$0xff]
    %v176 = vld [vmem:[%s2 + $0x58] sm:$0xff]
    %v177 = vld [vmem:[%s2 + $0x60] sm:$0xff]
    %v178 = vld [vmem:[%s2 + $0x68] sm:$0xff]
    %v179 = vld [vmem:[%s2 + $0x70] sm:$0xff]
    %v180 = vld [vmem:[%s2 + $0x78] sm:$0xff]
    %v181 = vld [vmem:[%s12] sm:$0x1]
    %v183 = vlaneseq
    %v184 = vshrl.u32 %v183, 7
    %v185 = vsub.s32 0, %v184
    %v186 = vrot.slane %v181, %v185
    %188 = vmatprep.subr.mxu0 0.0
    %189 = vmatpush1.msra.mxu0 %v165
    %190 = vmatprep.subr.mxu0 0.0
    %191 = vmatpush1.msra.mxu0 %v166
    %192 = vmatprep.subr.mxu0 0.0
    %193 = vmatpush1.msra.mxu0 %v167
    %194 = vmatprep.subr.mxu0 0.0
    %195 = vmatpush1.msra.mxu0 %v168
    %196 = vmatprep.subr.mxu0 0.0
    %197 = vmatpush1.msra.mxu0 %v169
    %198 = vmatprep.subr.mxu0 0.0
    %199 = vmatpush1.msra.mxu0 %v170
    %200 = vmatprep.subr.mxu0 0.0
    %201 = vmatpush1.msra.mxu0 %v171
    %202 = vmatprep.subr.mxu0 0.0
    %203 = vmatpush1.msra.mxu0 %v172
    %204 = vmatprep.subr.mxu0 0.0
    %205 = vmatpush1.msra.mxu0 %v173
    %206 = vmatprep.subr.mxu0 0.0
    %207 = vmatpush1.msra.mxu0 %v174
    %208 = vmatprep.subr.mxu0 0.0
    %209 = vmatpush1.msra.mxu0 %v175
    %210 = vmatprep.subr.mxu0 0.0
    %211 = vmatpush1.msra.mxu0 %v176
    %212 = vmatprep.subr.mxu0 0.0
    %213 = vmatpush1.msra.mxu0 %v177
    %214 = vmatprep.subr.mxu0 0.0
    %215 = vmatpush1.msra.mxu0 %v178
    %216 = vmatprep.subr.mxu0 0.0
    %217 = vmatpush1.msra.mxu0 %v179
    %218 = vmatprep.subr.mxu0 0.0
    %219 = vmatpush1.msra.mxu0 %v180
    %220 = vmatprep.subr.mxu0 0.0
    %221 = vmatpush1.msra.mxu0 0.0
    %222 = vmatprep.subr.mxu0 0.0
    %223 = vmatpush1.msra.mxu0 0.0
    %224 = vmatprep.subr.mxu0 0.0
    %225 = vmatpush1.msra.mxu0 0.0
    %226 = vmatprep.subr.mxu0 0.0
    %227 = vmatpush1.msra.mxu0 0.0
    %228 = vmatprep.subr.mxu0 0.0
    %229 = vmatpush1.msra.mxu0 0.0
    %230 = vmatprep.subr.mxu0 0.0
    %231 = vmatpush1.msra.mxu0 0.0
    %232 = vmatprep.subr.mxu0 0.0
    %233 = vmatpush1.msra.mxu0 0.0
    %234 = vmatprep.subr.mxu0 0.0
    %235 = vmatpush1.msra.mxu0 0.0
    %236 = vmatprep.subr.mxu0 0.0
    %237 = vmatpush1.msra.mxu0 0.0
    %238 = vmatprep.subr.mxu0 0.0
    %239 = vmatpush1.msra.mxu0 0.0
    %240 = vmatprep.subr.mxu0 0.0
    %241 = vmatpush1.msra.mxu0 0.0
    %242 = vmatprep.subr.mxu0 0.0
    %243 = vmatpush1.msra.mxu0 0.0
    %244 = vmatprep.subr.mxu0 0.0
    %245 = vmatpush1.msra.mxu0 0.0
    %246 = vmatprep.subr.mxu0 0.0
    %247 = vmatpush1.msra.mxu0 0.0
    %248 = vmatprep.subr.mxu0 0.0
    %249 = vmatpush1.msra.mxu0 0.0
    %250 = vmatprep.subr.mxu0 0.0
    %251 = vmatpush1.msra.mxu0 0.0
    %252 = vmatprep.mubr.f32.mxu0 0.0
    %253 = vmatmul.mubr.f32.gmra.mrb[0].mxu0 %v164
    %v254 = vpop.f32.mrb[0].mxu0
    %v255 = vadd.f32 %v186, %v254
    %v256 = vpop.f32.mrb[0].mxu0
    %257 = vdwg.mxu0
    %v258 = vmax.f32 %v255, 0.0
    %v259 = vld [vmem:[%s3] sm:$0xff]
    %v260 = vld [vmem:[%s3 + $0x8] sm:$0xff]
    %v261 = vld [vmem:[%s3 + $0x10] sm:$0xff]
    %v262 = vld [vmem:[%s3 + $0x18] sm:$0xff]
    %v263 = vld [vmem:[%s3 + $0x20] sm:$0xff]
    %v264 = vld [vmem:[%s3 + $0x28] sm:$0xff]
    %v265 = vld [vmem:[%s3 + $0x30] sm:$0xff]
    %v266 = vld [vmem:[%s3 + $0x38] sm:$0xff]
    %v267 = vld [vmem:[%s3 + $0x40] sm:$0xff]
    %v268 = vld [vmem:[%s3 + $0x48] sm:$0xff]
    %v269 = vld [vmem:[%s3 + $0x50] sm:$0xff]
    %v270 = vld [vmem:[%s3 + $0x58] sm:$0xff]
    %v271 = vld [vmem:[%s3 + $0x60] sm:$0xff]
    %v272 = vld [vmem:[%s3 + $0x68] sm:$0xff]
    %v273 = vld [vmem:[%s3 + $0x70] sm:$0xff]
    %v274 = vld [vmem:[%s3 + $0x78] sm:$0xff]
    %v275 = vld [vmem:[%s13] sm:$0x1]
    %v277 = vlaneseq
    %v278 = vshrl.u32 %v277, 7
    %v279 = vsub.s32 0, %v278
    %v280 = vrot.slane %v275, %v279
    %282 = vmatprep.subr.mxu0 0.0
    %283 = vmatpush1.msra.mxu0 %v259
    %284 = vmatprep.subr.mxu0 0.0
    %285 = vmatpush1.msra.mxu0 %v260
    %286 = vmatprep.subr.mxu0 0.0
    %287 = vmatpush1.msra.mxu0 %v261
    %288 = vmatprep.subr.mxu0 0.0
    %289 = vmatpush1.msra.mxu0 %v262
    %290 = vmatprep.subr.mxu0 0.0
    %291 = vmatpush1.msra.mxu0 %v263
    %292 = vmatprep.subr.mxu0 0.0
    %293 = vmatpush1.msra.mxu0 %v264
    %294 = vmatprep.subr.mxu0 0.0
    %295 = vmatpush1.msra.mxu0 %v265
    %296 = vmatprep.subr.mxu0 0.0
    %297 = vmatpush1.msra.mxu0 %v266
    %298 = vmatprep.subr.mxu0 0.0
    %299 = vmatpush1.msra.mxu0 %v267
    %300 = vmatprep.subr.mxu0 0.0
    %301 = vmatpush1.msra.mxu0 %v268
    %302 = vmatprep.subr.mxu0 0.0
    %303 = vmatpush1.msra.mxu0 %v269
    %304 = vmatprep.subr.mxu0 0.0
    %305 = vmatpush1.msra.mxu0 %v270
    %306 = vmatprep.subr.mxu0 0.0
    %307 = vmatpush1.msra.mxu0 %v271
    %308 = vmatprep.subr.mxu0 0.0
    %309 = vmatpush1.msra.mxu0 %v272
    %310 = vmatprep.subr.mxu0 0.0
    %311 = vmatpush1.msra.mxu0 %v273
    %312 = vmatprep.subr.mxu0 0.0
    %313 = vmatpush1.msra.mxu0 %v274
    %314 = vmatprep.subr.mxu0 0.0
    %315 = vmatpush1.msra.mxu0 0.0
    %316 = vmatprep.subr.mxu0 0.0
    %317 = vmatpush1.msra.mxu0 0.0
    %318 = vmatprep.subr.mxu0 0.0
    %319 = vmatpush1.msra.mxu0 0.0
    %320 = vmatprep.subr.mxu0 0.0
    %321 = vmatpush1.msra.mxu0 0.0
    %322 = vmatprep.subr.mxu0 0.0
    %323 = vmatpush1.msra.mxu0 0.0
    %324 = vmatprep.subr.mxu0 0.0
    %325 = vmatpush1.msra.mxu0 0.0
    %326 = vmatprep.subr.mxu0 0.0
    %327 = vmatpush1.msra.mxu0 0.0
    %328 = vmatprep.subr.mxu0 0.0
    %329 = vmatpush1.msra.mxu0 0.0
    %330 = vmatprep.subr.mxu0 0.0
    %331 = vmatpush1.msra.mxu0 0.0
    %332 = vmatprep.subr.mxu0 0.0
    %333 = vmatpush1.msra.mxu0 0.0
    %334 = vmatprep.subr.mxu0 0.0
    %335 = vmatpush1.msra.mxu0 0.0
    %336 = vmatprep.subr.mxu0 0.0
    %337 = vmatpush1.msra.mxu0 0.0
    %338 = vmatprep.subr.mxu0 0.0
    %339 = vmatpush1.msra.mxu0 0.0
    %340 = vmatprep.subr.mxu0 0.0
    %341 = vmatpush1.msra.mxu0 0.0
    %342 = vmatprep.subr.mxu0 0.0
    %343 = vmatpush1.msra.mxu0 0.0
    %344 = vmatprep.subr.mxu0 0.0
    %345 = vmatpush1.msra.mxu0 0.0
    %346 = vmatprep.mubr.f32.mxu0 0.0
    %347 = vmatmul.mubr.f32.gmra.mrb[0].mxu0 %v258
    %v348 = vpop.f32.mrb[0].mxu0
    %v349 = vadd.f32 %v280, %v348
    %v350 = vpop.f32.mrb[0].mxu0
    %351 = vdwg.mxu0
    %v352 = vld [vmem:[%s4] sm:$0xff]
    %v353 = vld [vmem:[%s4 + $0x8] sm:$0xff]
    %v354 = vld [vmem:[%s4 + $0x10] sm:$0xff]
    %v355 = vld [vmem:[%s4 + $0x18] sm:$0xff]
    %v356 = vld [vmem:[%s4 + $0x20] sm:$0xff]
    %v357 = vld [vmem:[%s4 + $0x28] sm:$0xff]
    %v358 = vld [vmem:[%s4 + $0x30] sm:$0xff]
    %v359 = vld [vmem:[%s4 + $0x38] sm:$0xff]
    %v360 = vld [vmem:[%s4 + $0x40] sm:$0xff]
    %v361 = vld [vmem:[%s4 + $0x48] sm:$0xff]
    %v362 = vld [vmem:[%s4 + $0x50] sm:$0xff]
    %v363 = vld [vmem:[%s4 + $0x58] sm:$0xff]
    %v364 = vld [vmem:[%s4 + $0x60] sm:$0xff]
    %v365 = vld [vmem:[%s4 + $0x68] sm:$0xff]
    %v366 = vld [vmem:[%s4 + $0x70] sm:$0xff]
    %v367 = vld [vmem:[%s4 + $0x78] sm:$0xff]
    %v368 = vld [vmem:[%s14] sm:$0x1]
    %v370 = vlaneseq
    %v371 = vshrl.u32 %v370, 7
    %v372 = vsub.s32 0, %v371
    %v373 = vrot.slane %v368, %v372
    %375 = vmatprep.subr.mxu0 0.0
    %376 = vmatpush1.msra.mxu0 %v352
    %377 = vmatprep.subr.mxu0 0.0
    %378 = vmatpush1.msra.mxu0 %v353
    %379 = vmatprep.subr.mxu0 0.0
    %380 = vmatpush1.msra.mxu0 %v354
    %381 = vmatprep.subr.mxu0 0.0
    %382 = vmatpush1.msra.mxu0 %v355
    %383 = vmatprep.subr.mxu0 0.0
    %384 = vmatpush1.msra.mxu0 %v356
    %385 = vmatprep.subr.mxu0 0.0
    %386 = vmatpush1.msra.mxu0 %v357
    %387 = vmatprep.subr.mxu0 0.0
    %388 = vmatpush1.msra.mxu0 %v358
    %389 = vmatprep.subr.mxu0 0.0
    %390 = vmatpush1.msra.mxu0 %v359
    %391 = vmatprep.subr.mxu0 0.0
    %392 = vmatpush1.msra.mxu0 %v360
    %393 = vmatprep.subr.mxu0 0.0
    %394 = vmatpush1.msra.mxu0 %v361
    %395 = vmatprep.subr.mxu0 0.0
    %396 = vmatpush1.msra.mxu0 %v362
    %397 = vmatprep.subr.mxu0 0.0
    %398 = vmatpush1.msra.mxu0 %v363
    %399 = vmatprep.subr.mxu0 0.0
    %400 = vmatpush1.msra.mxu0 %v364
    %401 = vmatprep.subr.mxu0 0.0
    %402 = vmatpush1.msra.mxu0 %v365
    %403 = vmatprep.subr.mxu0 0.0
    %404 = vmatpush1.msra.mxu0 %v366
    %405 = vmatprep.subr.mxu0 0.0
    %406 = vmatpush1.msra.mxu0 %v367
    %407 = vmatprep.subr.mxu0 0.0
    %408 = vmatpush1.msra.mxu0 0.0
    %409 = vmatprep.subr.mxu0 0.0
    %410 = vmatpush1.msra.mxu0 0.0
    %411 = vmatprep.subr.mxu0 0.0
    %412 = vmatpush1.msra.mxu0 0.0
    %413 = vmatprep.subr.mxu0 0.0
    %414 = vmatpush1.msra.mxu0 0.0
    %415 = vmatprep.subr.mxu0 0.0
    %416 = vmatpush1.msra.mxu0 0.0
    %417 = vmatprep.subr.mxu0 0.0
    %418 = vmatpush1.msra.mxu0 0.0
    %419 = vmatprep.subr.mxu0 0.0
    %420 = vmatpush1.msra.mxu0 0.0
    %421 = vmatprep.subr.mxu0 0.0
    %422 = vmatpush1.msra.mxu0 0.0
    %423 = vmatprep.subr.mxu0 0.0
    %424 = vmatpush1.msra.mxu0 0.0
    %425 = vmatprep.subr.mxu0 0.0
    %426 = vmatpush1.msra.mxu0 0.0
    %427 = vmatprep.subr.mxu0 0.0
    %428 = vmatpush1.msra.mxu0 0.0
    %429 = vmatprep.subr.mxu0 0.0
    %430 = vmatpush1.msra.mxu0 0.0
    %431 = vmatprep.subr.mxu0 0.0
    %432 = vmatpush1.msra.mxu0 0.0
    %433 = vmatprep.subr.mxu0 0.0
    %434 = vmatpush1.msra.mxu0 0.0
    %435 = vmatprep.subr.mxu0 0.0
    %436 = vmatpush1.msra.mxu0 0.0
    %437 = vmatprep.subr.mxu0 0.0
    %438 = vmatpush1.msra.mxu0 0.0
    %439 = vmatprep.mubr.f32.mxu0 0.0
    %440 = vmatmul.mubr.f32.gmra.mrb[0].mxu0 %v349
    %v441 = vpop.f32.mrb[0].mxu0
    %v442 = vadd.f32 %v373, %v441
    %v443 = vpop.f32.mrb[0].mxu0
    %444 = vdwg.mxu0
    %v445 = vmax.f32 %v442, 0.0
    %v446 = vld [vmem:[%s5] sm:$0xff]
    %v447 = vld [vmem:[%s5 + $0x8] sm:$0xff]
    %v448 = vld [vmem:[%s5 + $0x10] sm:$0xff]
    %v449 = vld [vmem:[%s5 + $0x18] sm:$0xff]
    %v450 = vld [vmem:[%s5 + $0x20] sm:$0xff]
    %v451 = vld [vmem:[%s5 + $0x28] sm:$0xff]
    %v452 = vld [vmem:[%s5 + $0x30] sm:$0xff]
    %v453 = vld [vmem:[%s5 + $0x38] sm:$0xff]
    %v454 = vld [vmem:[%s5 + $0x40] sm:$0xff]
    %v455 = vld [vmem:[%s5 + $0x48] sm:$0xff]
    %v456 = vld [vmem:[%s5 + $0x50] sm:$0xff]
    %v457 = vld [vmem:[%s5 + $0x58] sm:$0xff]
    %v458 = vld [vmem:[%s5 + $0x60] sm:$0xff]
    %v459 = vld [vmem:[%s5 + $0x68] sm:$0xff]
    %v460 = vld [vmem:[%s5 + $0x70] sm:$0xff]
    %v461 = vld [vmem:[%s5 + $0x78] sm:$0xff]
    %v462 = vld [vmem:[%s15] sm:$0x1]
    %v464 = vlaneseq
    %v465 = vshrl.u32 %v464, 7
    %v466 = vsub.s32 0, %v465
    %v467 = vrot.slane %v462, %v466
    %469 = vmatprep.subr.mxu0 0.0
    %470 = vmatpush1.msra.mxu0 %v446
    %471 = vmatprep.subr.mxu0 0.0
    %472 = vmatpush1.msra.mxu0 %v447
    %473 = vmatprep.subr.mxu0 0.0
    %474 = vmatpush1.msra.mxu0 %v448
    %475 = vmatprep.subr.mxu0 0.0
    %476 = vmatpush1.msra.mxu0 %v449
    %477 = vmatprep.subr.mxu0 0.0
    %478 = vmatpush1.msra.mxu0 %v450
    %479 = vmatprep.subr.mxu0 0.0
    %480 = vmatpush1.msra.mxu0 %v451
    %481 = vmatprep.subr.mxu0 0.0
    %482 = vmatpush1.msra.mxu0 %v452
    %483 = vmatprep.subr.mxu0 0.0
    %484 = vmatpush1.msra.mxu0 %v453
    %485 = vmatprep.subr.mxu0 0.0
    %486 = vmatpush1.msra.mxu0 %v454
    %487 = vmatprep.subr.mxu0 0.0
    %488 = vmatpush1.msra.mxu0 %v455
    %489 = vmatprep.subr.mxu0 0.0
    %490 = vmatpush1.msra.mxu0 %v456
    %491 = vmatprep.subr.mxu0 0.0
    %492 = vmatpush1.msra.mxu0 %v457
    %493 = vmatprep.subr.mxu0 0.0
    %494 = vmatpush1.msra.mxu0 %v458
    %495 = vmatprep.subr.mxu0 0.0
    %496 = vmatpush1.msra.mxu0 %v459
    %497 = vmatprep.subr.mxu0 0.0
    %498 = vmatpush1.msra.mxu0 %v460
    %499 = vmatprep.subr.mxu0 0.0
    %500 = vmatpush1.msra.mxu0 %v461
    %501 = vmatprep.subr.mxu0 0.0
    %502 = vmatpush1.msra.mxu0 0.0
    %503 = vmatprep.subr.mxu0 0.0
    %504 = vmatpush1.msra.mxu0 0.0
    %505 = vmatprep.subr.mxu0 0.0
    %506 = vmatpush1.msra.mxu0 0.0
    %507 = vmatprep.subr.mxu0 0.0
    %508 = vmatpush1.msra.mxu0 0.0
    %509 = vmatprep.subr.mxu0 0.0
    %510 = vmatpush1.msra.mxu0 0.0
    %511 = vmatprep.subr.mxu0 0.0
    %512 = vmatpush1.msra.mxu0 0.0
    %513 = vmatprep.subr.mxu0 0.0
    %514 = vmatpush1.msra.mxu0 0.0
    %515 = vmatprep.subr.mxu0 0.0
    %516 = vmatpush1.msra.mxu0 0.0
    %517 = vmatprep.subr.mxu0 0.0
    %518 = vmatpush1.msra.mxu0 0.0
    %519 = vmatprep.subr.mxu0 0.0
    %520 = vmatpush1.msra.mxu0 0.0
    %521 = vmatprep.subr.mxu0 0.0
    %522 = vmatpush1.msra.mxu0 0.0
    %523 = vmatprep.subr.mxu0 0.0
    %524 = vmatpush1.msra.mxu0 0.0
    %525 = vmatprep.subr.mxu0 0.0
    %526 = vmatpush1.msra.mxu0 0.0
    %527 = vmatprep.subr.mxu0 0.0
    %528 = vmatpush1.msra.mxu0 0.0
    %529 = vmatprep.subr.mxu0 0.0
    %530 = vmatpush1.msra.mxu0 0.0
    %531 = vmatprep.subr.mxu0 0.0
    %532 = vmatpush1.msra.mxu0 0.0
    %533 = vmatprep.mubr.f32.mxu0 0.0
    %534 = vmatmul.mubr.f32.gmra.mrb[0].mxu0 %v445
    %v535 = vpop.f32.mrb[0].mxu0
    %v536 = vadd.f32 %v467, %v535
    %v537 = vpop.f32.mrb[0].mxu0
    %538 = vdwg.mxu0
    %v539 = vmax.f32 %v536, 0.0
    %v540 = vld [vmem:[%s6] sm:$0xff]
    %v541 = vld [vmem:[%s6 + $0x8] sm:$0xff]
    %v542 = vld [vmem:[%s6 + $0x10] sm:$0xff]
    %v543 = vld [vmem:[%s6 + $0x18] sm:$0xff]
    %v544 = vld [vmem:[%s6 + $0x20] sm:$0xff]
    %v545 = vld [vmem:[%s6 + $0x28] sm:$0xff]
    %v546 = vld [vmem:[%s6 + $0x30] sm:$0xff]
    %v547 = vld [vmem:[%s6 + $0x38] sm:$0xff]
    %v548 = vld [vmem:[%s6 + $0x40] sm:$0xff]
    %v549 = vld [vmem:[%s6 + $0x48] sm:$0xff]
    %v550 = vld [vmem:[%s6 + $0x50] sm:$0xff]
    %v551 = vld [vmem:[%s6 + $0x58] sm:$0xff]
    %v552 = vld [vmem:[%s6 + $0x60] sm:$0xff]
    %v553 = vld [vmem:[%s6 + $0x68] sm:$0xff]
    %v554 = vld [vmem:[%s6 + $0x70] sm:$0xff]
    %v555 = vld [vmem:[%s6 + $0x78] sm:$0xff]
    %v556 = vld [vmem:[%s16] sm:$0x1]
    %v558 = vlaneseq
    %v559 = vshrl.u32 %v558, 7
    %v560 = vsub.s32 0, %v559
    %v561 = vrot.slane %v556, %v560
    %563 = vmatprep.subr.mxu0 0.0
    %564 = vmatpush1.msra.mxu0 %v540
    %565 = vmatprep.subr.mxu0 0.0
    %566 = vmatpush1.msra.mxu0 %v541
    %567 = vmatprep.subr.mxu0 0.0
    %568 = vmatpush1.msra.mxu0 %v542
    %569 = vmatprep.subr.mxu0 0.0
    %570 = vmatpush1.msra.mxu0 %v543
    %571 = vmatprep.subr.mxu0 0.0
    %572 = vmatpush1.msra.mxu0 %v544
    %573 = vmatprep.subr.mxu0 0.0
    %574 = vmatpush1.msra.mxu0 %v545
    %575 = vmatprep.subr.mxu0 0.0
    %576 = vmatpush1.msra.mxu0 %v546
    %577 = vmatprep.subr.mxu0 0.0
    %578 = vmatpush1.msra.mxu0 %v547
    %579 = vmatprep.subr.mxu0 0.0
    %580 = vmatpush1.msra.mxu0 %v548
    %581 = vmatprep.subr.mxu0 0.0
    %582 = vmatpush1.msra.mxu0 %v549
    %583 = vmatprep.subr.mxu0 0.0
    %584 = vmatpush1.msra.mxu0 %v550
    %585 = vmatprep.subr.mxu0 0.0
    %586 = vmatpush1.msra.mxu0 %v551
    %587 = vmatprep.subr.mxu0 0.0
    %588 = vmatpush1.msra.mxu0 %v552
    %589 = vmatprep.subr.mxu0 0.0
    %590 = vmatpush1.msra.mxu0 %v553
    %591 = vmatprep.subr.mxu0 0.0
    %592 = vmatpush1.msra.mxu0 %v554
    %593 = vmatprep.subr.mxu0 0.0
    %594 = vmatpush1.msra.mxu0 %v555
    %595 = vmatprep.subr.mxu0 0.0
    %596 = vmatpush1.msra.mxu0 0.0
    %597 = vmatprep.subr.mxu0 0.0
    %598 = vmatpush1.msra.mxu0 0.0
    %599 = vmatprep.subr.mxu0 0.0
    %600 = vmatpush1.msra.mxu0 0.0
    %601 = vmatprep.subr.mxu0 0.0
    %602 = vmatpush1.msra.mxu0 0.0
    %603 = vmatprep.subr.mxu0 0.0
    %604 = vmatpush1.msra.mxu0 0.0
    %605 = vmatprep.subr.mxu0 0.0
    %606 = vmatpush1.msra.mxu0 0.0
    %607 = vmatprep.subr.mxu0 0.0
    %608 = vmatpush1.msra.mxu0 0.0
    %609 = vmatprep.subr.mxu0 0.0
    %610 = vmatpush1.msra.mxu0 0.0
    %611 = vmatprep.subr.mxu0 0.0
    %612 = vmatpush1.msra.mxu0 0.0
    %613 = vmatprep.subr.mxu0 0.0
    %614 = vmatpush1.msra.mxu0 0.0
    %615 = vmatprep.subr.mxu0 0.0
    %616 = vmatpush1.msra.mxu0 0.0
    %617 = vmatprep.subr.mxu0 0.0
    %618 = vmatpush1.msra.mxu0 0.0
    %619 = vmatprep.subr.mxu0 0.0
    %620 = vmatpush1.msra.mxu0 0.0
    %621 = vmatprep.subr.mxu0 0.0
    %622 = vmatpush1.msra.mxu0 0.0
    %623 = vmatprep.subr.mxu0 0.0
    %624 = vmatpush1.msra.mxu0 0.0
    %625 = vmatprep.subr.mxu0 0.0
    %626 = vmatpush1.msra.mxu0 0.0
    %627 = vmatprep.mubr.f32.mxu0 0.0
    %628 = vmatmul.mubr.f32.gmra.mrb[0].mxu0 %v539
    %v629 = vpop.f32.mrb[0].mxu0
    %v630 = vadd.f32 %v561, %v629
    %v631 = vpop.f32.mrb[0].mxu0
    %632 = vdwg.mxu0
    %633 = vst [vmem:[#allocation4] sm:$0xff] %v630
    %v634 = vld [vmem:[%s7] sm:$0xff]
    %v635 = vld [vmem:[%s7 + $0x8] sm:$0xff]
    %v636 = vld [vmem:[%s7 + $0x10] sm:$0xff]
    %v637 = vld [vmem:[%s7 + $0x18] sm:$0xff]
    %v638 = vld [vmem:[%s7 + $0x20] sm:$0xff]
    %v639 = vld [vmem:[%s7 + $0x28] sm:$0xff]
    %v640 = vld [vmem:[%s7 + $0x30] sm:$0xff]
    %v641 = vld [vmem:[%s7 + $0x38] sm:$0xff]
    %v642 = vld [vmem:[%s7 + $0x40] sm:$0xff]
    %v643 = vld [vmem:[%s7 + $0x48] sm:$0xff]
    %v644 = vld [vmem:[%s7 + $0x50] sm:$0xff]
    %v645 = vld [vmem:[%s7 + $0x58] sm:$0xff]
    %v646 = vld [vmem:[%s7 + $0x60] sm:$0xff]
    %v647 = vld [vmem:[%s7 + $0x68] sm:$0xff]
    %v648 = vld [vmem:[%s7 + $0x70] sm:$0xff]
    %v649 = vld [vmem:[%s7 + $0x78] sm:$0xff]
    %v650 = vld [vmem:[%s8] sm:$0xff]
    %v651 = vld [vmem:[%s8 + $0x8] sm:$0xff]
    %v652 = vld [vmem:[%s8 + $0x10] sm:$0xff]
    %v653 = vld [vmem:[%s8 + $0x18] sm:$0xff]
    %v654 = vld [vmem:[%s8 + $0x20] sm:$0xff]
    %v655 = vld [vmem:[%s8 + $0x28] sm:$0xff]
    %v656 = vld [vmem:[%s8 + $0x30] sm:$0xff]
    %v657 = vld [vmem:[%s8 + $0x38] sm:$0xff]
    %v658 = vld [vmem:[%s8 + $0x40] sm:$0xff]
    %v659 = vld [vmem:[%s8 + $0x48] sm:$0xff]
    %v660 = vld [vmem:[%s8 + $0x50] sm:$0xff]
    %v661 = vld [vmem:[%s8 + $0x58] sm:$0xff]
    %v662 = vld [vmem:[%s8 + $0x60] sm:$0xff]
    %v663 = vld [vmem:[%s8 + $0x68] sm:$0xff]
    %v664 = vld [vmem:[%s8 + $0x70] sm:$0xff]
    %v665 = vld [vmem:[%s8 + $0x78] sm:$0xff]
    %666 = vmatprep.subr.mxu0 0.0
    %667 = vmatpush1.msra.mxu0 %v650
    %668 = vmatprep.subr.mxu0 0.0
    %669 = vmatpush1.msra.mxu0 %v651
    %670 = vmatprep.subr.mxu0 0.0
    %671 = vmatpush1.msra.mxu0 %v652
    %672 = vmatprep.subr.mxu0 0.0
    %673 = vmatpush1.msra.mxu0 %v653
    %674 = vmatprep.subr.mxu0 0.0
    %675 = vmatpush1.msra.mxu0 %v654
    %676 = vmatprep.subr.mxu0 0.0
    %677 = vmatpush1.msra.mxu0 %v655
    %678 = vmatprep.subr.mxu0 0.0
    %679 = vmatpush1.msra.mxu0 %v656
    %680 = vmatprep.subr.mxu0 0.0
    %681 = vmatpush1.msra.mxu0 %v657
    %682 = vmatprep.subr.mxu0 0.0
    %683 = vmatpush1.msra.mxu0 %v658
    %684 = vmatprep.subr.mxu0 0.0
    %685 = vmatpush1.msra.mxu0 %v659
    %686 = vmatprep.subr.mxu0 0.0
    %687 = vmatpush1.msra.mxu0 %v660
    %688 = vmatprep.subr.mxu0 0.0
    %689 = vmatpush1.msra.mxu0 %v661
    %690 = vmatprep.subr.mxu0 0.0
    %691 = vmatpush1.msra.mxu0 %v662
    %692 = vmatprep.subr.mxu0 0.0
    %693 = vmatpush1.msra.mxu0 %v663
    %694 = vmatprep.subr.mxu0 0.0
    %695 = vmatpush1.msra.mxu0 %v664
    %696 = vmatprep.subr.mxu0 0.0
    %697 = vmatpush1.msra.mxu0 %v665
    %698 = vmatprep.subr.mxu0 0.0
    %699 = vmatpush1.msra.mxu0 0.0
    %700 = vmatprep.subr.mxu0 0.0
    %701 = vmatpush1.msra.mxu0 0.0
    %702 = vmatprep.subr.mxu0 0.0
    %703 = vmatpush1.msra.mxu0 0.0
    %704 = vmatprep.subr.mxu0 0.0
    %705 = vmatpush1.msra.mxu0 0.0
    %706 = vmatprep.subr.mxu0 0.0
    %707 = vmatpush1.msra.mxu0 0.0
    %708 = vmatprep.subr.mxu0 0.0
    %709 = vmatpush1.msra.mxu0 0.0
    %710 = vmatprep.subr.mxu0 0.0
    %711 = vmatpush1.msra.mxu0 0.0
    %712 = vmatprep.subr.mxu0 0.0
    %713 = vmatpush1.msra.mxu0 0.0
    %714 = vmatprep.subr.mxu0 0.0
    %715 = vmatpush1.msra.mxu0 0.0
    %716 = vmatprep.subr.mxu0 0.0
    %717 = vmatpush1.msra.mxu0 0.0
    %718 = vmatprep.subr.mxu0 0.0
    %719 = vmatpush1.msra.mxu0 0.0
    %720 = vmatprep.subr.mxu0 0.0
    %721 = vmatpush1.msra.mxu0 0.0
    %722 = vmatprep.subr.mxu0 0.0
    %723 = vmatpush1.msra.mxu0 0.0
    %724 = vmatprep.subr.mxu0 0.0
    %725 = vmatpush1.msra.mxu0 0.0
    %726 = vmatprep.subr.mxu0 0.0
    %727 = vmatpush1.msra.mxu0 0.0
    %728 = vmatprep.subr.mxu0 0.0
    %729 = vmatpush1.msra.mxu0 0.0
    %730 = vmatprep.mubr.f32.mxu0 0.0
    %731 = vmatmul.mubr.f32.gmra.mrb[0].mxu0 %v630
    %v732 = vpop.f32.mrb[0].mxu0
    %v733 = vadd.f32 0.0, %v732
    %v734 = vpop.f32.mrb[0].mxu0
    %735 = vdwg.mxu0
    %736 = vmatprep.subr.mxu0 0.0
    %737 = vmatpush1.msra.mxu0 %v634
    %738 = vmatprep.subr.mxu0 0.0
    %739 = vmatpush1.msra.mxu0 %v635
    %740 = vmatprep.subr.mxu0 0.0
    %741 = vmatpush1.msra.mxu0 %v636
    %742 = vmatprep.subr.mxu0 0.0
    %743 = vmatpush1.msra.mxu0 %v637
    %744 = vmatprep.subr.mxu0 0.0
    %745 = vmatpush1.msra.mxu0 %v638
    %746 = vmatprep.subr.mxu0 0.0
    %747 = vmatpush1.msra.mxu0 %v639
    %748 = vmatprep.subr.mxu0 0.0
    %749 = vmatpush1.msra.mxu0 %v640
    %750 = vmatprep.subr.mxu0 0.0
    %751 = vmatpush1.msra.mxu0 %v641
    %752 = vmatprep.subr.mxu0 0.0
    %753 = vmatpush1.msra.mxu0 %v642
    %754 = vmatprep.subr.mxu0 0.0
    %755 = vmatpush1.msra.mxu0 %v643
    %756 = vmatprep.subr.mxu0 0.0
    %757 = vmatpush1.msra.mxu0 %v644
    %758 = vmatprep.subr.mxu0 0.0
    %759 = vmatpush1.msra.mxu0 %v645
    %760 = vmatprep.subr.mxu0 0.0
    %761 = vmatpush1.msra.mxu0 %v646
    %762 = vmatprep.subr.mxu0 0.0
    %763 = vmatpush1.msra.mxu0 %v647
    %764 = vmatprep.subr.mxu0 0.0
    %765 = vmatpush1.msra.mxu0 %v648
    %766 = vmatprep.subr.mxu0 0.0
    %767 = vmatpush1.msra.mxu0 %v649
    %768 = vmatprep.subr.mxu0 0.0
    %769 = vmatpush1.msra.mxu0 0.0
    %770 = vmatprep.subr.mxu0 0.0
    %771 = vmatpush1.msra.mxu0 0.0
    %772 = vmatprep.subr.mxu0 0.0
    %773 = vmatpush1.msra.mxu0 0.0
    %774 = vmatprep.subr.mxu0 0.0
    %775 = vmatpush1.msra.mxu0 0.0
    %776 = vmatprep.subr.mxu0 0.0
    %777 = vmatpush1.msra.mxu0 0.0
    %778 = vmatprep.subr.mxu0 0.0
    %779 = vmatpush1.msra.mxu0 0.0
    %780 = vmatprep.subr.mxu0 0.0
    %781 = vmatpush1.msra.mxu0 0.0
    %782 = vmatprep.subr.mxu0 0.0
    %783 = vmatpush1.msra.mxu0 0.0
    %784 = vmatprep.subr.mxu0 0.0
    %785 = vmatpush1.msra.mxu0 0.0
    %786 = vmatprep.subr.mxu0 0.0
    %787 = vmatpush1.msra.mxu0 0.0
    %788 = vmatprep.subr.mxu0 0.0
    %789 = vmatpush1.msra.mxu0 0.0
    %790 = vmatprep.subr.mxu0 0.0
    %791 = vmatpush1.msra.mxu0 0.0
    %792 = vmatprep.subr.mxu0 0.0
    %793 = vmatpush1.msra.mxu0 0.0
    %794 = vmatprep.subr.mxu0 0.0
    %795 = vmatpush1.msra.mxu0 0.0
    %796 = vmatprep.subr.mxu0 0.0
    %797 = vmatpush1.msra.mxu0 0.0
    %798 = vmatprep.subr.mxu0 0.0
    %799 = vmatpush1.msra.mxu0 0.0
    %800 = vmatprep.mubr.f32.mxu0 0.0
    %801 = vmatmul.mubr.f32.gmra.mrb[0].mxu0 %v349
    %v802 = vpop.f32.mrb[0].mxu0
    %v803 = vadd.f32 %v733, %v802
    %v804 = vpop.f32.mrb[0].mxu0
    %805 = vdwg.mxu0
    %v806 = vld [vmem:[%s17] sm:$0x1]
    %v808 = vlaneseq
    %v809 = vshrl.u32 %v808, 7
    %v810 = vsub.s32 0, %v809
    %v811 = vrot.slane %v806, %v810
    %v813 = vadd.f32 %v803, %v811
    %v814 = vmax.f32 %v813, 0.0
    %v815 = vld [vmem:[%s9] sm:$0xff]
    %v816 = vld [vmem:[%s9 + $0x8] sm:$0xff]
    %v817 = vld [vmem:[%s9 + $0x10] sm:$0xff]
    %v818 = vld [vmem:[%s9 + $0x18] sm:$0xff]
    %v819 = vld [vmem:[%s9 + $0x20] sm:$0xff]
    %v820 = vld [vmem:[%s9 + $0x28] sm:$0xff]
    %v821 = vld [vmem:[%s9 + $0x30] sm:$0xff]
    %v822 = vld [vmem:[%s9 + $0x38] sm:$0xff]
    %v823 = vld [vmem:[%s9 + $0x40] sm:$0xff]
    %v824 = vld [vmem:[%s9 + $0x48] sm:$0xff]
    %v825 = vld [vmem:[%s9 + $0x50] sm:$0xff]
    %v826 = vld [vmem:[%s9 + $0x58] sm:$0xff]
    %v827 = vld [vmem:[%s9 + $0x60] sm:$0xff]
    %v828 = vld [vmem:[%s9 + $0x68] sm:$0xff]
    %v829 = vld [vmem:[%s9 + $0x70] sm:$0xff]
    %v830 = vld [vmem:[%s9 + $0x78] sm:$0xff]
    %v831 = vld [vmem:[%s18] sm:$0x1]
    %v833 = vlaneseq
    %v834 = vshrl.u32 %v833, 7
    %v835 = vsub.s32 0, %v834
    %v836 = vrot.slane %v831, %v835
    %838 = vmatprep.subr.mxu0 0.0
    %839 = vmatpush1.msra.mxu0 %v815
    %840 = vmatprep.subr.mxu0 0.0
    %841 = vmatpush1.msra.mxu0 %v816
    %842 = vmatprep.subr.mxu0 0.0
    %843 = vmatpush1.msra.mxu0 %v817
    %844 = vmatprep.subr.mxu0 0.0
    %845 = vmatpush1.msra.mxu0 %v818
    %846 = vmatprep.subr.mxu0 0.0
    %847 = vmatpush1.msra.mxu0 %v819
    %848 = vmatprep.subr.mxu0 0.0
    %849 = vmatpush1.msra.mxu0 %v820
    %850 = vmatprep.subr.mxu0 0.0
    %851 = vmatpush1.msra.mxu0 %v821
    %852 = vmatprep.subr.mxu0 0.0
    %853 = vmatpush1.msra.mxu0 %v822
    %854 = vmatprep.subr.mxu0 0.0
    %855 = vmatpush1.msra.mxu0 %v823
    %856 = vmatprep.subr.mxu0 0.0
    %857 = vmatpush1.msra.mxu0 %v824
    %858 = vmatprep.subr.mxu0 0.0
    %859 = vmatpush1.msra.mxu0 %v825
    %860 = vmatprep.subr.mxu0 0.0
    %861 = vmatpush1.msra.mxu0 %v826
    %862 = vmatprep.subr.mxu0 0.0
    %863 = vmatpush1.msra.mxu0 %v827
    %864 = vmatprep.subr.mxu0 0.0
    %865 = vmatpush1.msra.mxu0 %v828
    %866 = vmatprep.subr.mxu0 0.0
    %867 = vmatpush1.msra.mxu0 %v829
    %868 = vmatprep.subr.mxu0 0.0
    %869 = vmatpush1.msra.mxu0 %v830
    %870 = vmatprep.subr.mxu0 0.0
    %871 = vmatpush1.msra.mxu0 0.0
    %872 = vmatprep.subr.mxu0 0.0
    %873 = vmatpush1.msra.mxu0 0.0
    %874 = vmatprep.subr.mxu0 0.0
    %875 = vmatpush1.msra.mxu0 0.0
    %876 = vmatprep.subr.mxu0 0.0
    %877 = vmatpush1.msra.mxu0 0.0
    %878 = vmatprep.subr.mxu0 0.0
    %879 = vmatpush1.msra.mxu0 0.0
    %880 = vmatprep.subr.mxu0 0.0
    %881 = vmatpush1.msra.mxu0 0.0
    %882 = vmatprep.subr.mxu0 0.0
    %883 = vmatpush1.msra.mxu0 0.0
    %884 = vmatprep.subr.mxu0 0.0
    %885 = vmatpush1.msra.mxu0 0.0
    %886 = vmatprep.subr.mxu0 0.0
    %887 = vmatpush1.msra.mxu0 0.0
    %888 = vmatprep.subr.mxu0 0.0
    %889 = vmatpush1.msra.mxu0 0.0
    %890 = vmatprep.subr.mxu0 0.0
    %891 = vmatpush1.msra.mxu0 0.0
    %892 = vmatprep.subr.mxu0 0.0
    %893 = vmatpush1.msra.mxu0 0.0
    %894 = vmatprep.subr.mxu0 0.0
    %895 = vmatpush1.msra.mxu0 0.0
    %896 = vmatprep.subr.mxu0 0.0
    %897 = vmatpush1.msra.mxu0 0.0
    %898 = vmatprep.subr.mxu0 0.0
    %899 = vmatpush1.msra.mxu0 0.0
    %900 = vmatprep.subr.mxu0 0.0
    %901 = vmatpush1.msra.mxu0 0.0
    %902 = vmatprep.mubr.f32.mxu0 0.0
    %903 = vmatmul.mubr.f32.gmra.mrb[0].mxu0 %v814
    %v904 = vpop.f32.mrb[0].mxu0
    %v905 = vadd.f32 %v836, %v904
    %v906 = vpop.f32.mrb[0].mxu0
    %907 = vdwg.mxu0
    %v908 = vmax.f32 %v905, 0.0
    %v909 = vld [vmem:[%s10] sm:$0xff]
    %v910 = vld [vmem:[%s10 + $0x8] sm:$0xff]
    %v911 = vld [vmem:[%s10 + $0x10] sm:$0xff]
    %v912 = vld [vmem:[%s10 + $0x18] sm:$0xff]
    %v913 = vld [vmem:[%s10 + $0x20] sm:$0xff]
    %v914 = vld [vmem:[%s10 + $0x28] sm:$0xff]
    %v915 = vld [vmem:[%s10 + $0x30] sm:$0xff]
    %v916 = vld [vmem:[%s10 + $0x38] sm:$0xff]
    %v917 = vld [vmem:[%s10 + $0x40] sm:$0xff]
    %v918 = vld [vmem:[%s10 + $0x48] sm:$0xff]
    %v919 = vld [vmem:[%s10 + $0x50] sm:$0xff]
    %v920 = vld [vmem:[%s10 + $0x58] sm:$0xff]
    %v921 = vld [vmem:[%s10 + $0x60] sm:$0xff]
    %v922 = vld [vmem:[%s10 + $0x68] sm:$0xff]
    %v923 = vld [vmem:[%s10 + $0x70] sm:$0xff]
    %v924 = vld [vmem:[%s10 + $0x78] sm:$0xff]
    %v925 = vld [vmem:[%s19] sm:$0x1]
    %v927 = vlaneseq
    %v928 = vshrl.u32 %v927, 7
    %v929 = vsub.s32 0, %v928
    %v930 = vrot.slane %v925, %v929
    %932 = vmatprep.subr.mxu0 0.0
    %933 = vmatpush1.msra.mxu0 %v909
    %934 = vmatprep.subr.mxu0 0.0
    %935 = vmatpush1.msra.mxu0 %v910
    %936 = vmatprep.subr.mxu0 0.0
    %937 = vmatpush1.msra.mxu0 %v911
    %938 = vmatprep.subr.mxu0 0.0
    %939 = vmatpush1.msra.mxu0 %v912
    %940 = vmatprep.subr.mxu0 0.0
    %941 = vmatpush1.msra.mxu0 %v913
    %942 = vmatprep.subr.mxu0 0.0
    %943 = vmatpush1.msra.mxu0 %v914
    %944 = vmatprep.subr.mxu0 0.0
    %945 = vmatpush1.msra.mxu0 %v915
    %946 = vmatprep.subr.mxu0 0.0
    %947 = vmatpush1.msra.mxu0 %v916
    %948 = vmatprep.subr.mxu0 0.0
    %949 = vmatpush1.msra.mxu0 %v917
    %950 = vmatprep.subr.mxu0 0.0
    %951 = vmatpush1.msra.mxu0 %v918
    %952 = vmatprep.subr.mxu0 0.0
    %953 = vmatpush1.msra.mxu0 %v919
    %954 = vmatprep.subr.mxu0 0.0
    %955 = vmatpush1.msra.mxu0 %v920
    %956 = vmatprep.subr.mxu0 0.0
    %957 = vmatpush1.msra.mxu0 %v921
    %958 = vmatprep.subr.mxu0 0.0
    %959 = vmatpush1.msra.mxu0 %v922
    %960 = vmatprep.subr.mxu0 0.0
    %961 = vmatpush1.msra.mxu0 %v923
    %962 = vmatprep.subr.mxu0 0.0
    %963 = vmatpush1.msra.mxu0 %v924
    %964 = vmatprep.subr.mxu0 0.0
    %965 = vmatpush1.msra.mxu0 0.0
    %966 = vmatprep.subr.mxu0 0.0
    %967 = vmatpush1.msra.mxu0 0.0
    %968 = vmatprep.subr.mxu0 0.0
    %969 = vmatpush1.msra.mxu0 0.0
    %970 = vmatprep.subr.mxu0 0.0
    %971 = vmatpush1.msra.mxu0 0.0
    %972 = vmatprep.subr.mxu0 0.0
    %973 = vmatpush1.msra.mxu0 0.0
    %974 = vmatprep.subr.mxu0 0.0
    %975 = vmatpush1.msra.mxu0 0.0
    %976 = vmatprep.subr.mxu0 0.0
    %977 = vmatpush1.msra.mxu0 0.0
    %978 = vmatprep.subr.mxu0 0.0
    %979 = vmatpush1.msra.mxu0 0.0
    %980 = vmatprep.subr.mxu0 0.0
    %981 = vmatpush1.msra.mxu0 0.0
    %982 = vmatprep.subr.mxu0 0.0
    %983 = vmatpush1.msra.mxu0 0.0
    %984 = vmatprep.subr.mxu0 0.0
    %985 = vmatpush1.msra.mxu0 0.0
    %986 = vmatprep.subr.mxu0 0.0
    %987 = vmatpush1.msra.mxu0 0.0
    %988 = vmatprep.subr.mxu0 0.0
    %989 = vmatpush1.msra.mxu0 0.0
    %990 = vmatprep.subr.mxu0 0.0
    %991 = vmatpush1.msra.mxu0 0.0
    %992 = vmatprep.subr.mxu0 0.0
    %993 = vmatpush1.msra.mxu0 0.0
    %994 = vmatprep.subr.mxu0 0.0
    %995 = vmatpush1.msra.mxu0 0.0
    %996 = vmatprep.mubr.f32.mxu0 0.0
    %997 = vmatmul.mubr.f32.gmra.mrb[0].mxu0 %v908
    %v998 = vpop.f32.mrb[0].mxu0
    %v999 = vadd.f32 %v930, %v998
    %v1000 = vpop.f32.mrb[0].mxu0
    %1001 = vdwg.mxu0
    %1002 = vst [vmem:[#allocation2] sm:$0xff] %v999
    %1003 = vst [vmem:[%s22] sm:$0xff] 0.0
    %p1004 = scmp.eq.s32.totalorder 0, 0
    // Predicated region
    $region82: #{autoencoder_forward.1} parent=1 // pred_check
      %p1005 = pneg %p1004
    $region83: #{autoencoder_forward.1} parent=1 // pred_check_branch
      %1007 = sbr.rel (%p1005) target = $region85
    $region84: #{autoencoder_forward.1} parent=1 // pred_region
      %v1008 = vld [vmem:[%s7] sm:$0xff]
      %v1009 = vld [vmem:[%s7 + $0x8] sm:$0xff]
      %v1010 = vld [vmem:[%s7 + $0x10] sm:$0xff]
      %v1011 = vld [vmem:[%s7 + $0x18] sm:$0xff]
      %v1012 = vld [vmem:[%s7 + $0x20] sm:$0xff]
      %v1013 = vld [vmem:[%s7 + $0x28] sm:$0xff]
      %v1014 = vld [vmem:[%s7 + $0x30] sm:$0xff]
      %v1015 = vld [vmem:[%s7 + $0x38] sm:$0xff]
      %v1016 = vld [vmem:[%s7 + $0x40] sm:$0xff]
      %v1017 = vld [vmem:[%s7 + $0x48] sm:$0xff]
      %v1018 = vld [vmem:[%s7 + $0x50] sm:$0xff]
      %v1019 = vld [vmem:[%s7 + $0x58] sm:$0xff]
      %v1020 = vld [vmem:[%s7 + $0x60] sm:$0xff]
      %v1021 = vld [vmem:[%s7 + $0x68] sm:$0xff]
      %v1022 = vld [vmem:[%s7 + $0x70] sm:$0xff]
      %v1023 = vld [vmem:[%s7 + $0x78] sm:$0xff]
      %v1024 = vmul.f32 %v1008, %v1008
      %v1025 = vmul.f32 %v1009, %v1009
      %v1026 = vmul.f32 %v1010, %v1010
      %v1027 = vmul.f32 %v1011, %v1011
      %v1028 = vmul.f32 %v1012, %v1012
      %v1029 = vmul.f32 %v1013, %v1013
      %v1030 = vmul.f32 %v1014, %v1014
      %v1031 = vmul.f32 %v1015, %v1015
      %v1032 = vmul.f32 %v1016, %v1016
      %v1033 = vmul.f32 %v1017, %v1017
      %v1034 = vmul.f32 %v1018, %v1018
      %v1035 = vmul.f32 %v1019, %v1019
      %v1036 = vmul.f32 %v1020, %v1020
      %v1037 = vmul.f32 %v1021, %v1021
      %v1038 = vmul.f32 %v1022, %v1022
      %v1039 = vmul.f32 %v1023, %v1023
      %v1040 = vadd.f32 %v1024, %v1025
      %v1041 = vadd.f32 %v1040, %v1026
      %v1042 = vadd.f32 %v1041, %v1027
      %v1043 = vadd.f32 %v1042, %v1028
      %v1044 = vadd.f32 %v1043, %v1029
      %v1045 = vadd.f32 %v1044, %v1030
      %v1046 = vadd.f32 %v1045, %v1031
      %v1047 = vadd.f32 %v1046, %v1032
      %v1048 = vadd.f32 %v1047, %v1033
      %v1049 = vadd.f32 %v1048, %v1034
      %v1050 = vadd.f32 %v1049, %v1035
      %v1051 = vadd.f32 %v1050, %v1036
      %v1052 = vadd.f32 %v1051, %v1037
      %v1053 = vadd.f32 %v1052, %v1038
      %v1054 = vadd.f32 %v1053, %v1039
      %1055 = vadd.xlane.f32.xlu0 %v1054
      %v1056 = vpop.xlane.xlu0 %1055
      %v1057 = vrot.slane %v1056, 4
      %v1058 = vadd.f32 %v1056, %v1057
      %v1059 = vrot.slane %v1058, 2
      %v1060 = vadd.f32 %v1058, %v1059
      %v1061 = vrot.slane %v1060, 1
      %v1062 = vadd.f32 %v1060, %v1061
      %s1063 = vtos %v1062
      %s1064 = sadd.f32 %s1063, 0.0
      %v1065 = vld [vmem:[%s8] sm:$0xff]
      %v1066 = vld [vmem:[%s8 + $0x8] sm:$0xff]
      %v1067 = vld [vmem:[%s8 + $0x10] sm:$0xff]
      %v1068 = vld [vmem:[%s8 + $0x18] sm:$0xff]
      %v1069 = vld [vmem:[%s8 + $0x20] sm:$0xff]
      %v1070 = vld [vmem:[%s8 + $0x28] sm:$0xff]
      %v1071 = vld [vmem:[%s8 + $0x30] sm:$0xff]
      %v1072 = vld [vmem:[%s8 + $0x38] sm:$0xff]
      %v1073 = vld [vmem:[%s8 + $0x40] sm:$0xff]
      %v1074 = vld [vmem:[%s8 + $0x48] sm:$0xff]
      %v1075 = vld [vmem:[%s8 + $0x50] sm:$0xff]
      %v1076 = vld [vmem:[%s8 + $0x58] sm:$0xff]
      %v1077 = vld [vmem:[%s8 + $0x60] sm:$0xff]
      %v1078 = vld [vmem:[%s8 + $0x68] sm:$0xff]
      %v1079 = vld [vmem:[%s8 + $0x70] sm:$0xff]
      %v1080 = vld [vmem:[%s8 + $0x78] sm:$0xff]
      %v1081 = vmul.f32 %v1065, %v1065
      %v1082 = vmul.f32 %v1066, %v1066
      %v1083 = vmul.f32 %v1067, %v1067
      %v1084 = vmul.f32 %v1068, %v1068
      %v1085 = vmul.f32 %v1069, %v1069
      %v1086 = vmul.f32 %v1070, %v1070
      %v1087 = vmul.f32 %v1071, %v1071
      %v1088 = vmul.f32 %v1072, %v1072
      %v1089 = vmul.f32 %v1073, %v1073
      %v1090 = vmul.f32 %v1074, %v1074
      %v1091 = vmul.f32 %v1075, %v1075
      %v1092 = vmul.f32 %v1076, %v1076
      %v1093 = vmul.f32 %v1077, %v1077
      %v1094 = vmul.f32 %v1078, %v1078
      %v1095 = vmul.f32 %v1079, %v1079
      %v1096 = vmul.f32 %v1080, %v1080
      %v1097 = vadd.f32 %v1081, %v1082
      %v1098 = vadd.f32 %v1097, %v1083
      %v1099 = vadd.f32 %v1098, %v1084
      %v1100 = vadd.f32 %v1099, %v1085
      %v1101 = vadd.f32 %v1100, %v1086
      %v1102 = vadd.f32 %v1101, %v1087
      %v1103 = vadd.f32 %v1102, %v1088
      %v1104 = vadd.f32 %v1103, %v1089
      %v1105 = vadd.f32 %v1104, %v1090
      %v1106 = vadd.f32 %v1105, %v1091
      %v1107 = vadd.f32 %v1106, %v1092
      %v1108 = vadd.f32 %v1107, %v1093
      %v1109 = vadd.f32 %v1108, %v1094
      %v1110 = vadd.f32 %v1109, %v1095
      %v1111 = vadd.f32 %v1110, %v1096
      %1112 = vadd.xlane.f32.xlu0 %v1111
      %v1113 = vpop.xlane.xlu0 %1112
      %v1114 = vrot.slane %v1113, 4
      %v1115 = vadd.f32 %v1113, %v1114
      %v1116 = vrot.slane %v1115, 2
      %v1117 = vadd.f32 %v1115, %v1116
      %v1118 = vrot.slane %v1117, 1
      %v1119 = vadd.f32 %v1117, %v1118
      %s1120 = vtos %v1119
      %s1121 = sadd.f32 %s1120, 0.0
      %s1122 = sadd.f32 %s1064, %s1121
      %v1123 = vstv %s1122
      %v1124 = vrsqrt.pop %v1123
      %v1125 = vmul.f32 %v1123, %v1124
      %vm1126 = vcmp.eq.f32.partialorder %v1123, inf
      %v1127 = vsel %vm1126, %v1123, %v1125
      %vm1128 = vcmp.eq.f32.partialorder %v1123, 0.0
      %v1129 = vand.u32 %v1123, 2147483648
      %v1130 = vsel %vm1128, %v1129, %v1127
      %s1131 = vtos %v1130
      %v1132 = vld [vmem:[%s1] sm:$0xff]
      %v1133 = vld [vmem:[%s1 + $0x8] sm:$0xff]
      %v1134 = vld [vmem:[%s1 + $0x10] sm:$0xff]
      %v1135 = vld [vmem:[%s1 + $0x18] sm:$0xff]
      %v1136 = vld [vmem:[%s1 + $0x20] sm:$0xff]
      %v1137 = vld [vmem:[%s1 + $0x28] sm:$0xff]
      %v1138 = vld [vmem:[%s1 + $0x30] sm:$0xff]
      %v1139 = vld [vmem:[%s1 + $0x38] sm:$0xff]
      %v1140 = vld [vmem:[%s1 + $0x40] sm:$0xff]
      %v1141 = vld [vmem:[%s1 + $0x48] sm:$0xff]
      %v1142 = vld [vmem:[%s1 + $0x50] sm:$0xff]
      %v1143 = vld [vmem:[%s1 + $0x58] sm:$0xff]
      %v1144 = vld [vmem:[%s1 + $0x60] sm:$0xff]
      %v1145 = vld [vmem:[%s1 + $0x68] sm:$0xff]
      %v1146 = vld [vmem:[%s1 + $0x70] sm:$0xff]
      %v1147 = vld [vmem:[%s1 + $0x78] sm:$0xff]
      %v1148 = vmul.f32 %v1132, %v1132
      %v1149 = vmul.f32 %v1133, %v1133
      %v1150 = vmul.f32 %v1134, %v1134
      %v1151 = vmul.f32 %v1135, %v1135
      %v1152 = vmul.f32 %v1136, %v1136
      %v1153 = vmul.f32 %v1137, %v1137
      %v1154 = vmul.f32 %v1138, %v1138
      %v1155 = vmul.f32 %v1139, %v1139
      %v1156 = vmul.f32 %v1140, %v1140
      %v1157 = vmul.f32 %v1141, %v1141
      %v1158 = vmul.f32 %v1142, %v1142
      %v1159 = vmul.f32 %v1143, %v1143
      %v1160 = vmul.f32 %v1144, %v1144
      %v1161 = vmul.f32 %v1145, %v1145
      %v1162 = vmul.f32 %v1146, %v1146
      %v1163 = vmul.f32 %v1147, %v1147
      %v1164 = vadd.f32 %v1148, %v1149
      %v1165 = vadd.f32 %v1164, %v1150
      %v1166 = vadd.f32 %v1165, %v1151
      %v1167 = vadd.f32 %v1166, %v1152
      %v1168 = vadd.f32 %v1167, %v1153
      %v1169 = vadd.f32 %v1168, %v1154
      %v1170 = vadd.f32 %v1169, %v1155
      %v1171 = vadd.f32 %v1170, %v1156
      %v1172 = vadd.f32 %v1171, %v1157
      %v1173 = vadd.f32 %v1172, %v1158
      %v1174 = vadd.f32 %v1173, %v1159
      %v1175 = vadd.f32 %v1174, %v1160
      %v1176 = vadd.f32 %v1175, %v1161
      %v1177 = vadd.f32 %v1176, %v1162
      %v1178 = vadd.f32 %v1177, %v1163
      %1179 = vadd.xlane.f32.xlu0 %v1178
      %v1180 = vpop.xlane.xlu0 %1179
      %v1181 = vrot.slane %v1180, 4
      %v1182 = vadd.f32 %v1180, %v1181
      %v1183 = vrot.slane %v1182, 2
      %v1184 = vadd.f32 %v1182, %v1183
      %v1185 = vrot.slane %v1184, 1
      %v1186 = vadd.f32 %v1184, %v1185
      %s1187 = vtos %v1186
      %s1188 = sadd.f32 %s1187, 0.0
      %v1189 = vstv %s1188
      %v1190 = vrsqrt.pop %v1189
      %v1191 = vmul.f32 %v1189, %v1190
      %vm1192 = vcmp.eq.f32.partialorder %v1189, inf
      %v1193 = vsel %vm1192, %v1189, %v1191
      %vm1194 = vcmp.eq.f32.partialorder %v1189, 0.0
      %v1195 = vand.u32 %v1189, 2147483648
      %v1196 = vsel %vm1194, %v1195, %v1193
      %s1197 = vtos %v1196
      %s1198 = sadd.f32 %s1131, %s1197
      %v1199 = vld [vmem:[%s2] sm:$0xff]
      %v1200 = vld [vmem:[%s2 + $0x8] sm:$0xff]
      %v1201 = vld [vmem:[%s2 + $0x10] sm:$0xff]
      %v1202 = vld [vmem:[%s2 + $0x18] sm:$0xff]
      %v1203 = vld [vmem:[%s2 + $0x20] sm:$0xff]
      %v1204 = vld [vmem:[%s2 + $0x28] sm:$0xff]
      %v1205 = vld [vmem:[%s2 + $0x30] sm:$0xff]
      %v1206 = vld [vmem:[%s2 + $0x38] sm:$0xff]
      %v1207 = vld [vmem:[%s2 + $0x40] sm:$0xff]
      %v1208 = vld [vmem:[%s2 + $0x48] sm:$0xff]
      %v1209 = vld [vmem:[%s2 + $0x50] sm:$0xff]
      %v1210 = vld [vmem:[%s2 + $0x58] sm:$0xff]
      %v1211 = vld [vmem:[%s2 + $0x60] sm:$0xff]
      %v1212 = vld [vmem:[%s2 + $0x68] sm:$0xff]
      %v1213 = vld [vmem:[%s2 + $0x70] sm:$0xff]
      %v1214 = vld [vmem:[%s2 + $0x78] sm:$0xff]
      %v1215 = vmul.f32 %v1199, %v1199
      %v1216 = vmul.f32 %v1200, %v1200
      %v1217 = vmul.f32 %v1201, %v1201
      %v1218 = vmul.f32 %v1202, %v1202
      %v1219 = vmul.f32 %v1203, %v1203
      %v1220 = vmul.f32 %v1204, %v1204
      %v1221 = vmul.f32 %v1205, %v1205
      %v1222 = vmul.f32 %v1206, %v1206
      %v1223 = vmul.f32 %v1207, %v1207
      %v1224 = vmul.f32 %v1208, %v1208
      %v1225 = vmul.f32 %v1209, %v1209
      %v1226 = vmul.f32 %v1210, %v1210
      %v1227 = vmul.f32 %v1211, %v1211
      %v1228 = vmul.f32 %v1212, %v1212
      %v1229 = vmul.f32 %v1213, %v1213
      %v1230 = vmul.f32 %v1214, %v1214
      %v1231 = vadd.f32 %v1215, %v1216
      %v1232 = vadd.f32 %v1231, %v1217
      %v1233 = vadd.f32 %v1232, %v1218
      %v1234 = vadd.f32 %v1233, %v1219
      %v1235 = vadd.f32 %v1234, %v1220
      %v1236 = vadd.f32 %v1235, %v1221
      %v1237 = vadd.f32 %v1236, %v1222
      %v1238 = vadd.f32 %v1237, %v1223
      %v1239 = vadd.f32 %v1238, %v1224
      %v1240 = vadd.f32 %v1239, %v1225
      %v1241 = vadd.f32 %v1240, %v1226
      %v1242 = vadd.f32 %v1241, %v1227
      %v1243 = vadd.f32 %v1242, %v1228
      %v1244 = vadd.f32 %v1243, %v1229
      %v1245 = vadd.f32 %v1244, %v1230
      %1246 = vadd.xlane.f32.xlu0 %v1245
      %v1247 = vpop.xlane.xlu0 %1246
      %v1248 = vrot.slane %v1247, 4
      %v1249 = vadd.f32 %v1247, %v1248
      %v1250 = vrot.slane %v1249, 2
      %v1251 = vadd.f32 %v1249, %v1250
      %v1252 = vrot.slane %v1251, 1
      %v1253 = vadd.f32 %v1251, %v1252
      %s1254 = vtos %v1253
      %s1255 = sadd.f32 %s1254, 0.0
      %v1256 = vstv %s1255
      %v1257 = vrsqrt.pop %v1256
      %v1258 = vmul.f32 %v1256, %v1257
      %vm1259 = vcmp.eq.f32.partialorder %v1256, inf
      %v1260 = vsel %vm1259, %v1256, %v1258
      %vm1261 = vcmp.eq.f32.partialorder %v1256, 0.0
      %v1262 = vand.u32 %v1256, 2147483648
      %v1263 = vsel %vm1261, %v1262, %v1260
      %s1264 = vtos %v1263
      %s1265 = sadd.f32 %s1198, %s1264
      %v1266 = vld [vmem:[%s3] sm:$0xff]
      %v1267 = vld [vmem:[%s3 + $0x8] sm:$0xff]
      %v1268 = vld [vmem:[%s3 + $0x10] sm:$0xff]
      %v1269 = vld [vmem:[%s3 + $0x18] sm:$0xff]
      %v1270 = vld [vmem:[%s3 + $0x20] sm:$0xff]
      %v1271 = vld [vmem:[%s3 + $0x28] sm:$0xff]
      %v1272 = vld [vmem:[%s3 + $0x30] sm:$0xff]
      %v1273 = vld [vmem:[%s3 + $0x38] sm:$0xff]
      %v1274 = vld [vmem:[%s3 + $0x40] sm:$0xff]
      %v1275 = vld [vmem:[%s3 + $0x48] sm:$0xff]
      %v1276 = vld [vmem:[%s3 + $0x50] sm:$0xff]
      %v1277 = vld [vmem:[%s3 + $0x58] sm:$0xff]
      %v1278 = vld [vmem:[%s3 + $0x60] sm:$0xff]
      %v1279 = vld [vmem:[%s3 + $0x68] sm:$0xff]
      %v1280 = vld [vmem:[%s3 + $0x70] sm:$0xff]
      %v1281 = vld [vmem:[%s3 + $0x78] sm:$0xff]
      %v1282 = vmul.f32 %v1266, %v1266
      %v1283 = vmul.f32 %v1267, %v1267
      %v1284 = vmul.f32 %v1268, %v1268
      %v1285 = vmul.f32 %v1269, %v1269
      %v1286 = vmul.f32 %v1270, %v1270
      %v1287 = vmul.f32 %v1271, %v1271
      %v1288 = vmul.f32 %v1272, %v1272
      %v1289 = vmul.f32 %v1273, %v1273
      %v1290 = vmul.f32 %v1274, %v1274
      %v1291 = vmul.f32 %v1275, %v1275
      %v1292 = vmul.f32 %v1276, %v1276
      %v1293 = vmul.f32 %v1277, %v1277
      %v1294 = vmul.f32 %v1278, %v1278
      %v1295 = vmul.f32 %v1279, %v1279
      %v1296 = vmul.f32 %v1280, %v1280
      %v1297 = vmul.f32 %v1281, %v1281
      %v1298 = vadd.f32 %v1282, %v1283
      %v1299 = vadd.f32 %v1298, %v1284
      %v1300 = vadd.f32 %v1299, %v1285
      %v1301 = vadd.f32 %v1300, %v1286
      %v1302 = vadd.f32 %v1301, %v1287
      %v1303 = vadd.f32 %v1302, %v1288
      %v1304 = vadd.f32 %v1303, %v1289
      %v1305 = vadd.f32 %v1304, %v1290
      %v1306 = vadd.f32 %v1305, %v1291
      %v1307 = vadd.f32 %v1306, %v1292
      %v1308 = vadd.f32 %v1307, %v1293
      %v1309 = vadd.f32 %v1308, %v1294
      %v1310 = vadd.f32 %v1309, %v1295
      %v1311 = vadd.f32 %v1310, %v1296
      %v1312 = vadd.f32 %v1311, %v1297
      %1313 = vadd.xlane.f32.xlu0 %v1312
      %v1314 = vpop.xlane.xlu0 %1313
      %v1315 = vrot.slane %v1314, 4
      %v1316 = vadd.f32 %v1314, %v1315
      %v1317 = vrot.slane %v1316, 2
      %v1318 = vadd.f32 %v1316, %v1317
      %v1319 = vrot.slane %v1318, 1
      %v1320 = vadd.f32 %v1318, %v1319
      %s1321 = vtos %v1320
      %s1322 = sadd.f32 %s1321, 0.0
      %v1323 = vstv %s1322
      %v1324 = vrsqrt.pop %v1323
      %v1325 = vmul.f32 %v1323, %v1324
      %vm1326 = vcmp.eq.f32.partialorder %v1323, inf
      %v1327 = vsel %vm1326, %v1323, %v1325
      %vm1328 = vcmp.eq.f32.partialorder %v1323, 0.0
      %v1329 = vand.u32 %v1323, 2147483648
      %v1330 = vsel %vm1328, %v1329, %v1327
      %s1331 = vtos %v1330
      %s1332 = sadd.f32 %s1265, %s1331
      %v1333 = vld [vmem:[%s4] sm:$0xff]
      %v1334 = vld [vmem:[%s4 + $0x8] sm:$0xff]
      %v1335 = vld [vmem:[%s4 + $0x10] sm:$0xff]
      %v1336 = vld [vmem:[%s4 + $0x18] sm:$0xff]
      %v1337 = vld [vmem:[%s4 + $0x20] sm:$0xff]
      %v1338 = vld [vmem:[%s4 + $0x28] sm:$0xff]
      %v1339 = vld [vmem:[%s4 + $0x30] sm:$0xff]
      %v1340 = vld [vmem:[%s4 + $0x38] sm:$0xff]
      %v1341 = vld [vmem:[%s4 + $0x40] sm:$0xff]
      %v1342 = vld [vmem:[%s4 + $0x48] sm:$0xff]
      %v1343 = vld [vmem:[%s4 + $0x50] sm:$0xff]
      %v1344 = vld [vmem:[%s4 + $0x58] sm:$0xff]
      %v1345 = vld [vmem:[%s4 + $0x60] sm:$0xff]
      %v1346 = vld [vmem:[%s4 + $0x68] sm:$0xff]
      %v1347 = vld [vmem:[%s4 + $0x70] sm:$0xff]
      %v1348 = vld [vmem:[%s4 + $0x78] sm:$0xff]
      %v1349 = vmul.f32 %v1333, %v1333
      %v1350 = vmul.f32 %v1334, %v1334
      %v1351 = vmul.f32 %v1335, %v1335
      %v1352 = vmul.f32 %v1336, %v1336
      %v1353 = vmul.f32 %v1337, %v1337
      %v1354 = vmul.f32 %v1338, %v1338
      %v1355 = vmul.f32 %v1339, %v1339
      %v1356 = vmul.f32 %v1340, %v1340
      %v1357 = vmul.f32 %v1341, %v1341
      %v1358 = vmul.f32 %v1342, %v1342
      %v1359 = vmul.f32 %v1343, %v1343
      %v1360 = vmul.f32 %v1344, %v1344
      %v1361 = vmul.f32 %v1345, %v1345
      %v1362 = vmul.f32 %v1346, %v1346
      %v1363 = vmul.f32 %v1347, %v1347
      %v1364 = vmul.f32 %v1348, %v1348
      %v1365 = vadd.f32 %v1349, %v1350
      %v1366 = vadd.f32 %v1365, %v1351
      %v1367 = vadd.f32 %v1366, %v1352
      %v1368 = vadd.f32 %v1367, %v1353
      %v1369 = vadd.f32 %v1368, %v1354
      %v1370 = vadd.f32 %v1369, %v1355
      %v1371 = vadd.f32 %v1370, %v1356
      %v1372 = vadd.f32 %v1371, %v1357
      %v1373 = vadd.f32 %v1372, %v1358
      %v1374 = vadd.f32 %v1373, %v1359
      %v1375 = vadd.f32 %v1374, %v1360
      %v1376 = vadd.f32 %v1375, %v1361
      %v1377 = vadd.f32 %v1376, %v1362
      %v1378 = vadd.f32 %v1377, %v1363
      %v1379 = vadd.f32 %v1378, %v1364
      %1380 = vadd.xlane.f32.xlu0 %v1379
      %v1381 = vpop.xlane.xlu0 %1380
      %v1382 = vrot.slane %v1381, 4
      %v1383 = vadd.f32 %v1381, %v1382
      %v1384 = vrot.slane %v1383, 2
      %v1385 = vadd.f32 %v1383, %v1384
      %v1386 = vrot.slane %v1385, 1
      %v1387 = vadd.f32 %v1385, %v1386
      %s1388 = vtos %v1387
      %s1389 = sadd.f32 %s1388, 0.0
      %v1390 = vstv %s1389
      %v1391 = vrsqrt.pop %v1390
      %v1392 = vmul.f32 %v1390, %v1391
      %vm1393 = vcmp.eq.f32.partialorder %v1390, inf
      %v1394 = vsel %vm1393, %v1390, %v1392
      %vm1395 = vcmp.eq.f32.partialorder %v1390, 0.0
      %v1396 = vand.u32 %v1390, 2147483648
      %v1397 = vsel %vm1395, %v1396, %v1394
      %s1398 = vtos %v1397
      %s1399 = sadd.f32 %s1332, %s1398
      %v1400 = vld [vmem:[%s5] sm:$0xff]
      %v1401 = vld [vmem:[%s5 + $0x8] sm:$0xff]
      %v1402 = vld [vmem:[%s5 + $0x10] sm:$0xff]
      %v1403 = vld [vmem:[%s5 + $0x18] sm:$0xff]
      %v1404 = vld [vmem:[%s5 + $0x20] sm:$0xff]
      %v1405 = vld [vmem:[%s5 + $0x28] sm:$0xff]
      %v1406 = vld [vmem:[%s5 + $0x30] sm:$0xff]
      %v1407 = vld [vmem:[%s5 + $0x38] sm:$0xff]
      %v1408 = vld [vmem:[%s5 + $0x40] sm:$0xff]
      %v1409 = vld [vmem:[%s5 + $0x48] sm:$0xff]
      %v1410 = vld [vmem:[%s5 + $0x50] sm:$0xff]
      %v1411 = vld [vmem:[%s5 + $0x58] sm:$0xff]
      %v1412 = vld [vmem:[%s5 + $0x60] sm:$0xff]
      %v1413 = vld [vmem:[%s5 + $0x68] sm:$0xff]
      %v1414 = vld [vmem:[%s5 + $0x70] sm:$0xff]
      %v1415 = vld [vmem:[%s5 + $0x78] sm:$0xff]
      %v1416 = vmul.f32 %v1400, %v1400
      %v1417 = vmul.f32 %v1401, %v1401
      %v1418 = vmul.f32 %v1402, %v1402
      %v1419 = vmul.f32 %v1403, %v1403
      %v1420 = vmul.f32 %v1404, %v1404
      %v1421 = vmul.f32 %v1405, %v1405
      %v1422 = vmul.f32 %v1406, %v1406
      %v1423 = vmul.f32 %v1407, %v1407
      %v1424 = vmul.f32 %v1408, %v1408
      %v1425 = vmul.f32 %v1409, %v1409
      %v1426 = vmul.f32 %v1410, %v1410
      %v1427 = vmul.f32 %v1411, %v1411
      %v1428 = vmul.f32 %v1412, %v1412
      %v1429 = vmul.f32 %v1413, %v1413
      %v1430 = vmul.f32 %v1414, %v1414
      %v1431 = vmul.f32 %v1415, %v1415
      %v1432 = vadd.f32 %v1416, %v1417
      %v1433 = vadd.f32 %v1432, %v1418
      %v1434 = vadd.f32 %v1433, %v1419
      %v1435 = vadd.f32 %v1434, %v1420
      %v1436 = vadd.f32 %v1435, %v1421
      %v1437 = vadd.f32 %v1436, %v1422
      %v1438 = vadd.f32 %v1437, %v1423
      %v1439 = vadd.f32 %v1438, %v1424
      %v1440 = vadd.f32 %v1439, %v1425
      %v1441 = vadd.f32 %v1440, %v1426
      %v1442 = vadd.f32 %v1441, %v1427
      %v1443 = vadd.f32 %v1442, %v1428
      %v1444 = vadd.f32 %v1443, %v1429
      %v1445 = vadd.f32 %v1444, %v1430
      %v1446 = vadd.f32 %v1445, %v1431
      %1447 = vadd.xlane.f32.xlu0 %v1446
      %v1448 = vpop.xlane.xlu0 %1447
      %v1449 = vrot.slane %v1448, 4
      %v1450 = vadd.f32 %v1448, %v1449
      %v1451 = vrot.slane %v1450, 2
      %v1452 = vadd.f32 %v1450, %v1451
      %v1453 = vrot.slane %v1452, 1
      %v1454 = vadd.f32 %v1452, %v1453
      %s1455 = vtos %v1454
      %s1456 = sadd.f32 %s1455, 0.0
      %v1457 = vstv %s1456
      %v1458 = vrsqrt.pop %v1457
      %v1459 = vmul.f32 %v1457, %v1458
      %vm1460 = vcmp.eq.f32.partialorder %v1457, inf
      %v1461 = vsel %vm1460, %v1457, %v1459
      %vm1462 = vcmp.eq.f32.partialorder %v1457, 0.0
      %v1463 = vand.u32 %v1457, 2147483648
      %v1464 = vsel %vm1462, %v1463, %v1461
      %s1465 = vtos %v1464
      %s1466 = sadd.f32 %s1399, %s1465
      %v1467 = vld [vmem:[%s6] sm:$0xff]
      %v1468 = vld [vmem:[%s6 + $0x8] sm:$0xff]
      %v1469 = vld [vmem:[%s6 + $0x10] sm:$0xff]
      %v1470 = vld [vmem:[%s6 + $0x18] sm:$0xff]
      %v1471 = vld [vmem:[%s6 + $0x20] sm:$0xff]
      %v1472 = vld [vmem:[%s6 + $0x28] sm:$0xff]
      %v1473 = vld [vmem:[%s6 + $0x30] sm:$0xff]
      %v1474 = vld [vmem:[%s6 + $0x38] sm:$0xff]
      %v1475 = vld [vmem:[%s6 + $0x40] sm:$0xff]
      %v1476 = vld [vmem:[%s6 + $0x48] sm:$0xff]
      %v1477 = vld [vmem:[%s6 + $0x50] sm:$0xff]
      %v1478 = vld [vmem:[%s6 + $0x58] sm:$0xff]
      %v1479 = vld [vmem:[%s6 + $0x60] sm:$0xff]
      %v1480 = vld [vmem:[%s6 + $0x68] sm:$0xff]
      %v1481 = vld [vmem:[%s6 + $0x70] sm:$0xff]
      %v1482 = vld [vmem:[%s6 + $0x78] sm:$0xff]
      %v1483 = vmul.f32 %v1467, %v1467
      %v1484 = vmul.f32 %v1468, %v1468
      %v1485 = vmul.f32 %v1469, %v1469
      %v1486 = vmul.f32 %v1470, %v1470
      %v1487 = vmul.f32 %v1471, %v1471
      %v1488 = vmul.f32 %v1472, %v1472
      %v1489 = vmul.f32 %v1473, %v1473
      %v1490 = vmul.f32 %v1474, %v1474
      %v1491 = vmul.f32 %v1475, %v1475
      %v1492 = vmul.f32 %v1476, %v1476
      %v1493 = vmul.f32 %v1477, %v1477
      %v1494 = vmul.f32 %v1478, %v1478
      %v1495 = vmul.f32 %v1479, %v1479
      %v1496 = vmul.f32 %v1480, %v1480
      %v1497 = vmul.f32 %v1481, %v1481
      %v1498 = vmul.f32 %v1482, %v1482
      %v1499 = vadd.f32 %v1483, %v1484
      %v1500 = vadd.f32 %v1499, %v1485
      %v1501 = vadd.f32 %v1500, %v1486
      %v1502 = vadd.f32 %v1501, %v1487
      %v1503 = vadd.f32 %v1502, %v1488
      %v1504 = vadd.f32 %v1503, %v1489
      %v1505 = vadd.f32 %v1504, %v1490
      %v1506 = vadd.f32 %v1505, %v1491
      %v1507 = vadd.f32 %v1506, %v1492
      %v1508 = vadd.f32 %v1507, %v1493
      %v1509 = vadd.f32 %v1508, %v1494
      %v1510 = vadd.f32 %v1509, %v1495
      %v1511 = vadd.f32 %v1510, %v1496
      %v1512 = vadd.f32 %v1511, %v1497
      %v1513 = vadd.f32 %v1512, %v1498
      %1514 = vadd.xlane.f32.xlu0 %v1513
      %v1515 = vpop.xlane.xlu0 %1514
      %v1516 = vrot.slane %v1515, 4
      %v1517 = vadd.f32 %v1515, %v1516
      %v1518 = vrot.slane %v1517, 2
      %v1519 = vadd.f32 %v1517, %v1518
      %v1520 = vrot.slane %v1519, 1
      %v1521 = vadd.f32 %v1519, %v1520
      %s1522 = vtos %v1521
      %s1523 = sadd.f32 %s1522, 0.0
      %v1524 = vstv %s1523
      %v1525 = vrsqrt.pop %v1524
      %v1526 = vmul.f32 %v1524, %v1525
      %vm1527 = vcmp.eq.f32.partialorder %v1524, inf
      %v1528 = vsel %vm1527, %v1524, %v1526
      %vm1529 = vcmp.eq.f32.partialorder %v1524, 0.0
      %v1530 = vand.u32 %v1524, 2147483648
      %v1531 = vsel %vm1529, %v1530, %v1528
      %s1532 = vtos %v1531
      %s1533 = sadd.f32 %s1466, %s1532
      %v1534 = vld [vmem:[%s9] sm:$0xff]
      %v1535 = vld [vmem:[%s9 + $0x8] sm:$0xff]
      %v1536 = vld [vmem:[%s9 + $0x10] sm:$0xff]
      %v1537 = vld [vmem:[%s9 + $0x18] sm:$0xff]
      %v1538 = vld [vmem:[%s9 + $0x20] sm:$0xff]
      %v1539 = vld [vmem:[%s9 + $0x28] sm:$0xff]
      %v1540 = vld [vmem:[%s9 + $0x30] sm:$0xff]
      %v1541 = vld [vmem:[%s9 + $0x38] sm:$0xff]
      %v1542 = vld [vmem:[%s9 + $0x40] sm:$0xff]
      %v1543 = vld [vmem:[%s9 + $0x48] sm:$0xff]
      %v1544 = vld [vmem:[%s9 + $0x50] sm:$0xff]
      %v1545 = vld [vmem:[%s9 + $0x58] sm:$0xff]
      %v1546 = vld [vmem:[%s9 + $0x60] sm:$0xff]
      %v1547 = vld [vmem:[%s9 + $0x68] sm:$0xff]
      %v1548 = vld [vmem:[%s9 + $0x70] sm:$0xff]
      %v1549 = vld [vmem:[%s9 + $0x78] sm:$0xff]
      %v1550 = vmul.f32 %v1534, %v1534
      %v1551 = vmul.f32 %v1535, %v1535
      %v1552 = vmul.f32 %v1536, %v1536
      %v1553 = vmul.f32 %v1537, %v1537
      %v1554 = vmul.f32 %v1538, %v1538
      %v1555 = vmul.f32 %v1539, %v1539
      %v1556 = vmul.f32 %v1540, %v1540
      %v1557 = vmul.f32 %v1541, %v1541
      %v1558 = vmul.f32 %v1542, %v1542
      %v1559 = vmul.f32 %v1543, %v1543
      %v1560 = vmul.f32 %v1544, %v1544
      %v1561 = vmul.f32 %v1545, %v1545
      %v1562 = vmul.f32 %v1546, %v1546
      %v1563 = vmul.f32 %v1547, %v1547
      %v1564 = vmul.f32 %v1548, %v1548
      %v1565 = vmul.f32 %v1549, %v1549
      %v1566 = vadd.f32 %v1550, %v1551
      %v1567 = vadd.f32 %v1566, %v1552
      %v1568 = vadd.f32 %v1567, %v1553
      %v1569 = vadd.f32 %v1568, %v1554
      %v1570 = vadd.f32 %v1569, %v1555
      %v1571 = vadd.f32 %v1570, %v1556
      %v1572 = vadd.f32 %v1571, %v1557
      %v1573 = vadd.f32 %v1572, %v1558
      %v1574 = vadd.f32 %v1573, %v1559
      %v1575 = vadd.f32 %v1574, %v1560
      %v1576 = vadd.f32 %v1575, %v1561
      %v1577 = vadd.f32 %v1576, %v1562
      %v1578 = vadd.f32 %v1577, %v1563
      %v1579 = vadd.f32 %v1578, %v1564
      %v1580 = vadd.f32 %v1579, %v1565
      %1581 = vadd.xlane.f32.xlu0 %v1580
      %v1582 = vpop.xlane.xlu0 %1581
      %v1583 = vrot.slane %v1582, 4
      %v1584 = vadd.f32 %v1582, %v1583
      %v1585 = vrot.slane %v1584, 2
      %v1586 = vadd.f32 %v1584, %v1585
      %v1587 = vrot.slane %v1586, 1
      %v1588 = vadd.f32 %v1586, %v1587
      %s1589 = vtos %v1588
      %s1590 = sadd.f32 %s1589, 0.0
      %v1591 = vstv %s1590
      %v1592 = vrsqrt.pop %v1591
      %v1593 = vmul.f32 %v1591, %v1592
      %vm1594 = vcmp.eq.f32.partialorder %v1591, inf
      %v1595 = vsel %vm1594, %v1591, %v1593
      %vm1596 = vcmp.eq.f32.partialorder %v1591, 0.0
      %v1597 = vand.u32 %v1591, 2147483648
      %v1598 = vsel %vm1596, %v1597, %v1595
      %s1599 = vtos %v1598
      %s1600 = sadd.f32 %s1533, %s1599
      %v1601 = vld [vmem:[%s10] sm:$0xff]
      %v1602 = vld [vmem:[%s10 + $0x8] sm:$0xff]
      %v1603 = vld [vmem:[%s10 + $0x10] sm:$0xff]
      %v1604 = vld [vmem:[%s10 + $0x18] sm:$0xff]
      %v1605 = vld [vmem:[%s10 + $0x20] sm:$0xff]
      %v1606 = vld [vmem:[%s10 + $0x28] sm:$0xff]
      %v1607 = vld [vmem:[%s10 + $0x30] sm:$0xff]
      %v1608 = vld [vmem:[%s10 + $0x38] sm:$0xff]
      %v1609 = vld [vmem:[%s10 + $0x40] sm:$0xff]
      %v1610 = vld [vmem:[%s10 + $0x48] sm:$0xff]
      %v1611 = vld [vmem:[%s10 + $0x50] sm:$0xff]
      %v1612 = vld [vmem:[%s10 + $0x58] sm:$0xff]
      %v1613 = vld [vmem:[%s10 + $0x60] sm:$0xff]
      %v1614 = vld [vmem:[%s10 + $0x68] sm:$0xff]
      %v1615 = vld [vmem:[%s10 + $0x70] sm:$0xff]
      %v1616 = vld [vmem:[%s10 + $0x78] sm:$0xff]
      %v1617 = vmul.f32 %v1601, %v1601
      %v1618 = vmul.f32 %v1602, %v1602
      %v1619 = vmul.f32 %v1603, %v1603
      %v1620 = vmul.f32 %v1604, %v1604
      %v1621 = vmul.f32 %v1605, %v1605
      %v1622 = vmul.f32 %v1606, %v1606
      %v1623 = vmul.f32 %v1607, %v1607
      %v1624 = vmul.f32 %v1608, %v1608
      %v1625 = vmul.f32 %v1609, %v1609
      %v1626 = vmul.f32 %v1610, %v1610
      %v1627 = vmul.f32 %v1611, %v1611
      %v1628 = vmul.f32 %v1612, %v1612
      %v1629 = vmul.f32 %v1613, %v1613
      %v1630 = vmul.f32 %v1614, %v1614
      %v1631 = vmul.f32 %v1615, %v1615
      %v1632 = vmul.f32 %v1616, %v1616
      %v1633 = vadd.f32 %v1617, %v1618
      %v1634 = vadd.f32 %v1633, %v1619
      %v1635 = vadd.f32 %v1634, %v1620
      %v1636 = vadd.f32 %v1635, %v1621
      %v1637 = vadd.f32 %v1636, %v1622
      %v1638 = vadd.f32 %v1637, %v1623
      %v1639 = vadd.f32 %v1638, %v1624
      %v1640 = vadd.f32 %v1639, %v1625
      %v1641 = vadd.f32 %v1640, %v1626
      %v1642 = vadd.f32 %v1641, %v1627
      %v1643 = vadd.f32 %v1642, %v1628
      %v1644 = vadd.f32 %v1643, %v1629
      %v1645 = vadd.f32 %v1644, %v1630
      %v1646 = vadd.f32 %v1645, %v1631
      %v1647 = vadd.f32 %v1646, %v1632
      %1648 = vadd.xlane.f32.xlu0 %v1647
      %v1649 = vpop.xlane.xlu0 %1648
      %v1650 = vrot.slane %v1649, 4
      %v1651 = vadd.f32 %v1649, %v1650
      %v1652 = vrot.slane %v1651, 2
      %v1653 = vadd.f32 %v1651, %v1652
      %v1654 = vrot.slane %v1653, 1
      %v1655 = vadd.f32 %v1653, %v1654
      %s1656 = vtos %v1655
      %s1657 = sadd.f32 %s1656, 0.0
      %v1658 = vstv %s1657
      %v1659 = vrsqrt.pop %v1658
      %v1660 = vmul.f32 %v1658, %v1659
      %vm1661 = vcmp.eq.f32.partialorder %v1658, inf
      %v1662 = vsel %vm1661, %v1658, %v1660
      %vm1663 = vcmp.eq.f32.partialorder %v1658, 0.0
      %v1664 = vand.u32 %v1658, 2147483648
      %v1665 = vsel %vm1663, %v1664, %v1662
      %s1666 = vtos %v1665
      %s1667 = sadd.f32 %s1600, %s1666
      %v1668 = vld [vmem:[%s11] sm:$0x1]
      %v1669 = vmul.f32 %v1668, %v1668
      %vm1670 = vcmask 1040384
      %v1671 = vsel %vm1670, %v1669, 0.0
      %1672 = vadd.xlane.f32.xlu0 %v1671
      %v1673 = vpop.xlane.xlu0 %1672
      %v1674 = vrot.slane %v1673, 4
      %v1675 = vadd.f32 %v1673, %v1674
      %v1676 = vrot.slane %v1675, 2
      %v1677 = vadd.f32 %v1675, %v1676
      %v1678 = vrot.slane %v1677, 1
      %v1679 = vadd.f32 %v1677, %v1678
      %s1680 = vtos %v1679
      %s1681 = sadd.f32 %s1680, 0.0
      %v1682 = vstv %s1681
      %v1683 = vrsqrt.pop %v1682
      %v1684 = vmul.f32 %v1682, %v1683
      %vm1685 = vcmp.eq.f32.partialorder %v1682, inf
      %v1686 = vsel %vm1685, %v1682, %v1684
      %vm1687 = vcmp.eq.f32.partialorder %v1682, 0.0
      %v1688 = vand.u32 %v1682, 2147483648
      %v1689 = vsel %vm1687, %v1688, %v1686
      %s1690 = vtos %v1689
      %s1691 = sadd.f32 %s1667, %s1690
      %v1692 = vld [vmem:[%s12] sm:$0x1]
      %v1693 = vmul.f32 %v1692, %v1692
      %v1694 = vsel %vm1670, %v1693, 0.0
      %1695 = vadd.xlane.f32.xlu0 %v1694
      %v1696 = vpop.xlane.xlu0 %1695
      %v1697 = vrot.slane %v1696, 4
      %v1698 = vadd.f32 %v1696, %v1697
      %v1699 = vrot.slane %v1698, 2
      %v1700 = vadd.f32 %v1698, %v1699
      %v1701 = vrot.slane %v1700, 1
      %v1702 = vadd.f32 %v1700, %v1701
      %s1703 = vtos %v1702
      %s1704 = sadd.f32 %s1703, 0.0
      %v1705 = vstv %s1704
      %v1706 = vrsqrt.pop %v1705
      %v1707 = vmul.f32 %v1705, %v1706
      %vm1708 = vcmp.eq.f32.partialorder %v1705, inf
      %v1709 = vsel %vm1708, %v1705, %v1707
      %vm1710 = vcmp.eq.f32.partialorder %v1705, 0.0
      %v1711 = vand.u32 %v1705, 2147483648
      %v1712 = vsel %vm1710, %v1711, %v1709
      %s1713 = vtos %v1712
      %s1714 = sadd.f32 %s1691, %s1713
      %v1715 = vld [vmem:[%s13] sm:$0x1]
      %v1716 = vmul.f32 %v1715, %v1715
      %v1717 = vsel %vm1670, %v1716, 0.0
      %1718 = vadd.xlane.f32.xlu0 %v1717
      %v1719 = vpop.xlane.xlu0 %1718
      %v1720 = vrot.slane %v1719, 4
      %v1721 = vadd.f32 %v1719, %v1720
      %v1722 = vrot.slane %v1721, 2
      %v1723 = vadd.f32 %v1721, %v1722
      %v1724 = vrot.slane %v1723, 1
      %v1725 = vadd.f32 %v1723, %v1724
      %s1726 = vtos %v1725
      %s1727 = sadd.f32 %s1726, 0.0
      %v1728 = vstv %s1727
      %v1729 = vrsqrt.pop %v1728
      %v1730 = vmul.f32 %v1728, %v1729
      %vm1731 = vcmp.eq.f32.partialorder %v1728, inf
      %v1732 = vsel %vm1731, %v1728, %v1730
      %vm1733 = vcmp.eq.f32.partialorder %v1728, 0.0
      %v1734 = vand.u32 %v1728, 2147483648
      %v1735 = vsel %vm1733, %v1734, %v1732
      %s1736 = vtos %v1735
      %s1737 = sadd.f32 %s1714, %s1736
      %v1738 = vld [vmem:[%s14] sm:$0x1]
      %v1739 = vmul.f32 %v1738, %v1738
      %v1740 = vsel %vm1670, %v1739, 0.0
      %1741 = vadd.xlane.f32.xlu0 %v1740
      %v1742 = vpop.xlane.xlu0 %1741
      %v1743 = vrot.slane %v1742, 4
      %v1744 = vadd.f32 %v1742, %v1743
      %v1745 = vrot.slane %v1744, 2
      %v1746 = vadd.f32 %v1744, %v1745
      %v1747 = vrot.slane %v1746, 1
      %v1748 = vadd.f32 %v1746, %v1747
      %s1749 = vtos %v1748
      %s1750 = sadd.f32 %s1749, 0.0
      %v1751 = vstv %s1750
      %v1752 = vrsqrt.pop %v1751
      %v1753 = vmul.f32 %v1751, %v1752
      %vm1754 = vcmp.eq.f32.partialorder %v1751, inf
      %v1755 = vsel %vm1754, %v1751, %v1753
      %vm1756 = vcmp.eq.f32.partialorder %v1751, 0.0
      %v1757 = vand.u32 %v1751, 2147483648
      %v1758 = vsel %vm1756, %v1757, %v1755
      %s1759 = vtos %v1758
      %s1760 = sadd.f32 %s1737, %s1759
      %v1761 = vld [vmem:[%s15] sm:$0x1]
      %v1762 = vmul.f32 %v1761, %v1761
      %v1763 = vsel %vm1670, %v1762, 0.0
      %1764 = vadd.xlane.f32.xlu0 %v1763
      %v1765 = vpop.xlane.xlu0 %1764
      %v1766 = vrot.slane %v1765, 4
      %v1767 = vadd.f32 %v1765, %v1766
      %v1768 = vrot.slane %v1767, 2
      %v1769 = vadd.f32 %v1767, %v1768
      %v1770 = vrot.slane %v1769, 1
      %v1771 = vadd.f32 %v1769, %v1770
      %s1772 = vtos %v1771
      %s1773 = sadd.f32 %s1772, 0.0
      %v1774 = vstv %s1773
      %v1775 = vrsqrt.pop %v1774
      %v1776 = vmul.f32 %v1774, %v1775
      %vm1777 = vcmp.eq.f32.partialorder %v1774, inf
      %v1778 = vsel %vm1777, %v1774, %v1776
      %vm1779 = vcmp.eq.f32.partialorder %v1774, 0.0
      %v1780 = vand.u32 %v1774, 2147483648
      %v1781 = vsel %vm1779, %v1780, %v1778
      %s1782 = vtos %v1781
      %s1783 = sadd.f32 %s1760, %s1782
      %v1784 = vld [vmem:[%s16] sm:$0x1]
      %v1785 = vmul.f32 %v1784, %v1784
      %v1786 = vsel %vm1670, %v1785, 0.0
      %1787 = vadd.xlane.f32.xlu0 %v1786
      %v1788 = vpop.xlane.xlu0 %1787
      %v1789 = vrot.slane %v1788, 4
      %v1790 = vadd.f32 %v1788, %v1789
      %v1791 = vrot.slane %v1790, 2
      %v1792 = vadd.f32 %v1790, %v1791
      %v1793 = vrot.slane %v1792, 1
      %v1794 = vadd.f32 %v1792, %v1793
      %s1795 = vtos %v1794
      %s1796 = sadd.f32 %s1795, 0.0
      %v1797 = vstv %s1796
      %v1798 = vrsqrt.pop %v1797
      %v1799 = vmul.f32 %v1797, %v1798
      %vm1800 = vcmp.eq.f32.partialorder %v1797, inf
      %v1801 = vsel %vm1800, %v1797, %v1799
      %vm1802 = vcmp.eq.f32.partialorder %v1797, 0.0
      %v1803 = vand.u32 %v1797, 2147483648
      %v1804 = vsel %vm1802, %v1803, %v1801
      %s1805 = vtos %v1804
      %s1806 = sadd.f32 %s1783, %s1805
      %v1807 = vld [vmem:[%s17] sm:$0x1]
      %v1808 = vmul.f32 %v1807, %v1807
      %v1809 = vsel %vm1670, %v1808, 0.0
      %1810 = vadd.xlane.f32.xlu0 %v1809
      %v1811 = vpop.xlane.xlu0 %1810
      %v1812 = vrot.slane %v1811, 4
      %v1813 = vadd.f32 %v1811, %v1812
      %v1814 = vrot.slane %v1813, 2
      %v1815 = vadd.f32 %v1813, %v1814
      %v1816 = vrot.slane %v1815, 1
      %v1817 = vadd.f32 %v1815, %v1816
      %s1818 = vtos %v1817
      %s1819 = sadd.f32 %s1818, 0.0
      %v1820 = vstv %s1819
      %v1821 = vrsqrt.pop %v1820
      %v1822 = vmul.f32 %v1820, %v1821
      %vm1823 = vcmp.eq.f32.partialorder %v1820, inf
      %v1824 = vsel %vm1823, %v1820, %v1822
      %vm1825 = vcmp.eq.f32.partialorder %v1820, 0.0
      %v1826 = vand.u32 %v1820, 2147483648
      %v1827 = vsel %vm1825, %v1826, %v1824
      %s1828 = vtos %v1827
      %s1829 = sadd.f32 %s1806, %s1828
      %v1830 = vld [vmem:[%s18] sm:$0x1]
      %v1831 = vmul.f32 %v1830, %v1830
      %v1832 = vsel %vm1670, %v1831, 0.0
      %1833 = vadd.xlane.f32.xlu0 %v1832
      %v1834 = vpop.xlane.xlu0 %1833
      %v1835 = vrot.slane %v1834, 4
      %v1836 = vadd.f32 %v1834, %v1835
      %v1837 = vrot.slane %v1836, 2
      %v1838 = vadd.f32 %v1836, %v1837
      %v1839 = vrot.slane %v1838, 1
      %v1840 = vadd.f32 %v1838, %v1839
      %s1841 = vtos %v1840
      %s1842 = sadd.f32 %s1841, 0.0
      %v1843 = vstv %s1842
      %v1844 = vrsqrt.pop %v1843
      %v1845 = vmul.f32 %v1843, %v1844
      %vm1846 = vcmp.eq.f32.partialorder %v1843, inf
      %v1847 = vsel %vm1846, %v1843, %v1845
      %vm1848 = vcmp.eq.f32.partialorder %v1843, 0.0
      %v1849 = vand.u32 %v1843, 2147483648
      %v1850 = vsel %vm1848, %v1849, %v1847
      %s1851 = vtos %v1850
      %s1852 = sadd.f32 %s1829, %s1851
      %v1853 = vld [vmem:[%s19] sm:$0x1]
      %v1854 = vmul.f32 %v1853, %v1853
      %v1855 = vsel %vm1670, %v1854, 0.0
      %1856 = vadd.xlane.f32.xlu0 %v1855
      %v1857 = vpop.xlane.xlu0 %1856
      %v1858 = vrot.slane %v1857, 4
      %v1859 = vadd.f32 %v1857, %v1858
      %v1860 = vrot.slane %v1859, 2
      %v1861 = vadd.f32 %v1859, %v1860
      %v1862 = vrot.slane %v1861, 1
      %v1863 = vadd.f32 %v1861, %v1862
      %s1864 = vtos %v1863
      %s1865 = sadd.f32 %s1864, 0.0
      %v1866 = vstv %s1865
      %v1867 = vrsqrt.pop %v1866
      %v1868 = vmul.f32 %v1866, %v1867
      %vm1869 = vcmp.eq.f32.partialorder %v1866, inf
      %v1870 = vsel %vm1869, %v1866, %v1868
      %vm1871 = vcmp.eq.f32.partialorder %v1866, 0.0
      %v1872 = vand.u32 %v1866, 2147483648
      %v1873 = vsel %vm1871, %v1872, %v1870
      %s1874 = vtos %v1873
      %s1875 = sadd.f32 %s1852, %s1874
      %v1876 = vstv %s1875
      %v1877 = vadd.f32 %v1876, 0.0
      %1878 = vst [vmem:[%s22] sm:$0xff] %v1877
    $region85: #{autoencoder_forward.1} parent=1 // pred_fallthru
      _
    // Predicated region
    $region86: #{autoencoder_forward.1} parent=1 // pred_check
      _
    $region87: #{autoencoder_forward.1} parent=1 // pred_check_branch
      %1880 = sbr.rel (0) target = $region89
    $region88: #{autoencoder_forward.1} parent=1 // pred_region
      %s1882 = ssub.s32 128, 128
      %1883 = vsyncadd [#allocation3], %s1882
      %s1885 = sshll.u32 [#allocation2], 4
      %s1886 = int_to_ptr.vmem [resolvable:$true] %s1885
      %1888 = dma.vmem_to_hbm [thread:$0]  %s1886, 128, %s20, [#allocation3]
    $region89: #{autoencoder_forward.1} parent=1 // pred_fallthru
      _
    // Predicated region
    $region90: #{autoencoder_forward.1} parent=1 // pred_check
      _
    $region91: #{autoencoder_forward.1} parent=1 // pred_check_branch
      %1890 = sbr.rel (0) target = $region93
    $region92: #{autoencoder_forward.1} parent=1 // pred_region
      %s1892 = ssub.s32 128, 128
      %1893 = vsyncadd [#allocation5], %s1892
      %s1895 = sshll.u32 [#allocation4], 4
      %s1896 = int_to_ptr.vmem [resolvable:$true] %s1895
      %1898 = dma.vmem_to_hbm [thread:$0]  %s1896, 128, %s21, [#allocation5]
    $region93: #{autoencoder_forward.1} parent=1 // pred_fallthru
      _
    // Predicated region
    $region94: #{autoencoder_forward.1} parent=1 // pred_check
      _
    $region95: #{autoencoder_forward.1} parent=1 // pred_check_branch
      %1900 = sbr.rel (0) target = $region97
    $region96: #{autoencoder_forward.1} parent=1 // pred_region
      _
    $region97: #{autoencoder_forward.1} parent=1 // pred_fallthru
      _
    // Predicated region
    $region98: #{autoencoder_forward.1} parent=1 // pred_check
      _
    $region99: #{autoencoder_forward.1} parent=1 // pred_check_branch
      %1902 = sbr.rel (0) target = $region101
    $region100: #{autoencoder_forward.1} parent=1 // pred_region
      %1903 = dma.done [#allocation3], 128
    $region101: #{autoencoder_forward.1} parent=1 // pred_fallthru
      _
    // Predicated region
    $region102: #{autoencoder_forward.1} parent=1 // pred_check
      _
    $region103: #{autoencoder_forward.1} parent=1 // pred_check_branch
      %1905 = sbr.rel (0) target = $region105
    $region104: #{autoencoder_forward.1} parent=1 // pred_region
      %1906 = dma.done [#allocation5], 128
    $region105: #{autoencoder_forward.1} parent=1 // pred_fallthru
      _
    // Predicated region
    $region106: #{autoencoder_forward.1} parent=1 // pred_check
      _
    $region107: #{autoencoder_forward.1} parent=1 // pred_check_branch
      %1908 = sbr.rel (0) target = $region109
    $region108: #{autoencoder_forward.1} parent=1 // pred_region
      _
    $region109: #{autoencoder_forward.1} parent=1 // pred_fallthru
      _
    %1909 = vsyncpa [#allocation3], 1
    %1910 = vsyncpa [#allocation5], 1

</llo_original>
